<compile_context>
chip_gen: v6e
topology: v6e:2x2x1
jax: 0.10.0
libtpu: 0.0.40
codegen_flags: <defaults>
</compile_context>

<pallas_src>
import functools

import jax
import jax.numpy as jnp
from jax.experimental import pallas as pl
from jax.experimental.pallas import tpu as pltpu


def _decoder_kernel(z_ref, x_ref,
                    w1_ref, b1_ref, w2_ref, b2_ref, w3_ref, b3_ref,
                    logits_ref, logp_ref):
    """Fused 3-layer MLP + Bernoulli log-prob for one (tile_b, S) slab of rows."""
    tb, S, L = z_ref.shape
    D = w3_ref.shape[1]
    rows = tb * S
    cdt = w1_ref.dtype                                   # bf16 compute dtype

    z = z_ref[...].reshape(rows, L)                      # (rows, L) bf16

    # Layer 1: Linear + ReLU  (bf16 x bf16 -> f32 accumulate on the MXU)
    h1 = jnp.dot(z, w1_ref[...], preferred_element_type=jnp.float32) + b1_ref[...]
    h1 = jnp.maximum(h1, 0.0)

    # Layer 2: Linear + ReLU
    h2 = jnp.dot(h1.astype(cdt), w2_ref[...],
                 preferred_element_type=jnp.float32) + b2_ref[...]
    h2 = jnp.maximum(h2, 0.0)

    # Layer 3: Linear -> logits (f32)
    logits = jnp.dot(h2.astype(cdt), w3_ref[...],
                     preferred_element_type=jnp.float32) + b3_ref[...]   # (rows, D)

    logits3 = logits.reshape(tb, S, D)
    logits_ref[...] = logits3.astype(logits_ref.dtype)

    # Bernoulli log-prob, reduced over the data dim:
    #   x*l - softplus(l) == (x - [l>0]) * l - log1p(exp(-|l|))
    x = x_ref[...].astype(jnp.float32)[:, None, :]       # (tb, 1, D) broadcast over S
    pos = jnp.where(logits3 > 0, 1.0, 0.0)
    log_p = (x - pos) * logits3 - jnp.log1p(jnp.exp(-jnp.abs(logits3)))
    logp_ref[...] = jnp.sum(log_p, axis=-1).astype(logp_ref.dtype)        # (tb, S)


def _pick_tile_b(B, S, L, H, D, vmem_budget_bytes=24 * 1024 * 1024, max_rows=1024):
    """Largest valid batch tile whose working set fits the VMEM budget."""
    candidates = [tb for tb in range(1, B + 1)
                  if B % tb == 0 and (tb == B or tb % 8 == 0)]

    def vmem_cost(tb):
        rows = tb * S
        pipelined = 2 * (rows * L * 2        # z block (bf16), double-buffered
                         + tb * D * 4        # x block (f32)
                         + rows * D * 4      # logits block (f32)
                         + rows * 4)         # log_p block (f32)
        intermediates = rows * (2 * H + 3 * D) * 4
        weights = 2 * ((L * H + H * H + H * D) * 2 + (2 * H + D) * 4)
        return pipelined + intermediates + weights

    fitting = [tb for tb in candidates
               if vmem_cost(tb) <= vmem_budget_bytes and tb * S <= max_rows]
    if not fitting:
        return min(candidates)
    best = max(fitting)
    if best == B:
        # Prefer >=2 grid steps (v7x has 2 TensorCores) when tiles are still big.
        smaller = [tb for tb in fitting if tb < B and tb * S >= 256]
        if smaller:
            best = max(smaller)
    return best


@functools.partial(jax.jit, static_argnames=("tile_b",))
def decoder_forward(z, x, params, tile_b=None):
    """z: (B, S, L) f32, x: (B, D) f32 -> (log_p (B,S,1) f32, logits (B,S,D) f32)."""
    w1, b1, w2, b2, w3, b3 = params
    B, S, L = z.shape
    H = w1.shape[1]
    D = w3.shape[1]

    if tile_b is None:
        tile_b = _pick_tile_b(B, S, L, H, D)
    if B % tile_b != 0 or not (tile_b == B or tile_b % 8 == 0):
        raise ValueError(f"tile_b={tile_b} must divide B={B} and be ==B or a multiple of 8")

    compute_dtype = jnp.bfloat16
    z_c = z.astype(compute_dtype)
    w1c, w2c, w3c = (w.astype(compute_dtype) for w in (w1, w2, w3))
    b1f, b2f, b3f = (b.astype(jnp.float32) for b in (b1, b2, b3))
    x_f = x.astype(jnp.float32)

    grid = (B // tile_b,)

    def full_spec(arr):
        nd = arr.ndim
        return pl.BlockSpec(arr.shape, lambda i, _nd=nd: (0,) * _nd)

    out_logits, out_logp = pl.pallas_call(
        _decoder_kernel,
        out_shape=(
            jax.ShapeDtypeStruct((B, S, D), jnp.float32),
            jax.ShapeDtypeStruct((B, S), jnp.float32),
        ),
        grid_spec=pltpu.PrefetchScalarGridSpec(
            num_scalar_prefetch=0,
            grid=grid,
            in_specs=[
                pl.BlockSpec((tile_b, S, L), lambda i: (i, 0, 0)),   # z batch-tile
                pl.BlockSpec((tile_b, D), lambda i: (i, 0)),         # x batch-tile (no repeat)
                full_spec(w1c), full_spec(b1f),
                full_spec(w2c), full_spec(b2f),
                full_spec(w3c), full_spec(b3f),
            ],
            out_specs=[
                pl.BlockSpec((tile_b, S, D), lambda i: (i, 0, 0)),   # logits (lane-dense D)
                pl.BlockSpec((tile_b, S), lambda i: (i, 0)),         # log_p slab
            ],
        ),
        compiler_params=pltpu.CompilerParams(
            dimension_semantics=("parallel",),
            vmem_limit_bytes=48 * 1024 * 1024,
        ),
    )(z_c, x_f, w1c, b1f, w2c, b2f, w3c, b3f)

    return out_logp[..., None], out_logits


def init_params(key, latent_size, data_size):
    """Deterministic init mimicking nn.Linear default (uniform +-1/sqrt(fan_in))."""
    hidden = latent_size * 2
    dims = [(latent_size, hidden), (hidden, hidden), (hidden, data_size)]
    params = []
    for fan_in, fan_out in dims:
        bound = fan_in ** -0.5
        key, kw, kb = jax.random.split(key, 3)
        params.append(jax.random.uniform(kw, (fan_in, fan_out), jnp.float32, -bound, bound))
        params.append(jax.random.uniform(kb, (1, fan_out), jnp.float32, -bound, bound))
    return tuple(params)


def _reference_forward(z, x, params, compute_dtype=jnp.bfloat16):
    """Pure-JAX reference with matching bf16 matmul / f32 accumulation."""
    w1, b1, w2, b2, w3, b3 = params

    def lin(h, w, b):
        return jnp.einsum("bsi,io->bso", h.astype(compute_dtype), w.astype(compute_dtype),
                          preferred_element_type=jnp.float32) + b[0].astype(jnp.float32)

    h1 = jnp.maximum(lin(z, w1, b1), 0.0)
    h2 = jnp.maximum(lin(h1, w2, b2), 0.0)
    logits = lin(h2, w3, b3)
    xb = x.astype(jnp.float32)[:, None, :]
    log_p = jnp.sum(xb * logits - jax.nn.softplus(logits), axis=-1, keepdims=True)
    return log_p, logits


if __name__ == "__main__":
    B, S, L, D = 32, 8, 16, 128          # batch, n_samples, latent_size, data_size
    key = jax.random.PRNGKey(0)
    k_param, k_z, k_x = jax.random.split(key, 3)

    params = init_params(k_param, L, D)
    z = jax.random.normal(k_z, (B, S, L), jnp.float32)
    x = jax.random.bernoulli(k_x, 0.5, (B, D)).astype(jnp.float32)

    ref_log_p, ref_logits = _reference_forward(z, x, params)

    # Run once with the auto-picked tile and once with an explicit multi-step grid.
    for tb in (None, 8):
        log_p, logits = decoder_forward(z, x, params, tile_b=tb)
        jax.block_until_ready((log_p, logits))
        assert logits.shape == (B, S, D) and log_p.shape == (B, S, 1)
        assert jnp.allclose(logits, ref_logits, atol=1e-2, rtol=1e-2), f"logits mismatch (tile_b={tb})"
        assert jnp.allclose(log_p, ref_log_p, atol=5e-2, rtol=1e-2), f"log_p mismatch (tile_b={tb})"

    # TODO(synk): stand_alone_train (RMSprop training loop) is host-side utility code,
    # not part of the forward pass, and is intentionally not translated.
    print("KERNEL_OK")
</pallas_src>

<mosaic_0001>
module attributes {stable_mosaic.version = 11 : i64} {
  func.func @_decoder_kernel(%arg0: i32, %arg1: memref<32x8x16xbf16, #tpu.memory_space<vmem>>, %arg2: memref<32x128xf32, #tpu.memory_space<vmem>>, %arg3: memref<16x32xbf16, #tpu.memory_space<vmem>>, %arg4: memref<1x32xf32, #tpu.memory_space<vmem>>, %arg5: memref<32x32xbf16, #tpu.memory_space<vmem>>, %arg6: memref<1x32xf32, #tpu.memory_space<vmem>>, %arg7: memref<32x128xbf16, #tpu.memory_space<vmem>>, %arg8: memref<1x128xf32, #tpu.memory_space<vmem>>, %arg9: memref<32x8x128xf32, #tpu.memory_space<vmem>>, %arg10: memref<32x8xf32, #tpu.memory_space<vmem>>) attributes {dimension_semantics = [#tpu.dimension_semantics<parallel>], iteration_bounds = array<i64: 1>, scalar_prefetch = 0 : i64, scratch_operands = 0 : i64, tpu.core_type = #tpu.core_type<tc>, window_params = [{transform_indices = @transform_0, window_bounds = array<i64: 32, 8, 16>}, {transform_indices = @transform_1, window_bounds = array<i64: 32, 128>}, {pipeline_mode = #tpu.pipeline_mode<synchronous>, transform_indices = @transform_2, window_bounds = array<i64: 16, 32>}, {pipeline_mode = #tpu.pipeline_mode<synchronous>, transform_indices = @transform_3, window_bounds = array<i64: 1, 32>}, {pipeline_mode = #tpu.pipeline_mode<synchronous>, transform_indices = @transform_4, window_bounds = array<i64: 32, 32>}, {pipeline_mode = #tpu.pipeline_mode<synchronous>, transform_indices = @transform_5, window_bounds = array<i64: 1, 32>}, {pipeline_mode = #tpu.pipeline_mode<synchronous>, transform_indices = @transform_6, window_bounds = array<i64: 32, 128>}, {pipeline_mode = #tpu.pipeline_mode<synchronous>, transform_indices = @transform_7, window_bounds = array<i64: 1, 128>}, {transform_indices = @transform_8, window_bounds = array<i64: 32, 8, 128>}, {transform_indices = @transform_9, window_bounds = array<i64: 32, 8>}]} {
    %c0 = arith.constant 0 : index
    %c0_0 = arith.constant 0 : index
    %c0_1 = arith.constant 0 : index
    %0 = vector.load %arg1[%c0, %c0_0, %c0_1] : memref<32x8x16xbf16, #tpu.memory_space<vmem>>, vector<32x8x16xbf16>
    %1 = vector.shape_cast %0 : vector<32x8x16xbf16> to vector<256x16xbf16>
    %c0_2 = arith.constant 0 : index
    %c0_3 = arith.constant 0 : index
    %2 = vector.load %arg3[%c0_2, %c0_3] : memref<16x32xbf16, #tpu.memory_space<vmem>>, vector<16x32xbf16>
    %cst = arith.constant dense<0.000000e+00> : vector<256x32xf32>
    %3 = tpu.matmul %1, %2, %cst {dimension_numbers = #tpu.dot_dimension_numbers<[1], [0], [0], [1], [0, 0, 1, 1], [], []>} : vector<256x16xbf16>, vector<16x32xbf16>, vector<256x32xf32> -> vector<256x32xf32>
    %c0_4 = arith.constant 0 : index
    %c0_5 = arith.constant 0 : index
    %4 = vector.load %arg4[%c0_4, %c0_5] : memref<1x32xf32, #tpu.memory_space<vmem>>, vector<1x32xf32>
    %5 = vector.broadcast %4 : vector<1x32xf32> to vector<256x32xf32>
    %6 = arith.addf %3, %5 : vector<256x32xf32>
    %cst_6 = arith.constant 0.000000e+00 : f32
    %7 = vector.broadcast %cst_6 : f32 to vector<256x32xf32>
    %8 = arith.maximumf %6, %7 : vector<256x32xf32>
    %9 = arith.truncf %8 : vector<256x32xf32> to vector<256x32xbf16>
    %c0_7 = arith.constant 0 : index
    %c0_8 = arith.constant 0 : index
    %10 = vector.load %arg5[%c0_7, %c0_8] : memref<32x32xbf16, #tpu.memory_space<vmem>>, vector<32x32xbf16>
    %cst_9 = arith.constant dense<0.000000e+00> : vector<256x32xf32>
    %11 = tpu.matmul %9, %10, %cst_9 {dimension_numbers = #tpu.dot_dimension_numbers<[1], [0], [0], [1], [0, 0, 1, 1], [], []>} : vector<256x32xbf16>, vector<32x32xbf16>, vector<256x32xf32> -> vector<256x32xf32>
    %c0_10 = arith.constant 0 : index
    %c0_11 = arith.constant 0 : index
    %12 = vector.load %arg6[%c0_10, %c0_11] : memref<1x32xf32, #tpu.memory_space<vmem>>, vector<1x32xf32>
    %13 = vector.broadcast %12 : vector<1x32xf32> to vector<256x32xf32>
    %14 = arith.addf %11, %13 : vector<256x32xf32>
    %cst_12 = arith.constant 0.000000e+00 : f32
    %15 = vector.broadcast %cst_12 : f32 to vector<256x32xf32>
    %16 = arith.maximumf %14, %15 : vector<256x32xf32>
    %17 = arith.truncf %16 : vector<256x32xf32> to vector<256x32xbf16>
    %c0_13 = arith.constant 0 : index
    %c0_14 = arith.constant 0 : index
    %18 = vector.load %arg7[%c0_13, %c0_14] : memref<32x128xbf16, #tpu.memory_space<vmem>>, vector<32x128xbf16>
    %cst_15 = arith.constant dense<0.000000e+00> : vector<256x128xf32>
    %19 = tpu.matmul %17, %18, %cst_15 {dimension_numbers = #tpu.dot_dimension_numbers<[1], [0], [0], [1], [0, 0, 1, 1], [], []>} : vector<256x32xbf16>, vector<32x128xbf16>, vector<256x128xf32> -> vector<256x128xf32>
    %c0_16 = arith.constant 0 : index
    %c0_17 = arith.constant 0 : index
    %20 = vector.load %arg8[%c0_16, %c0_17] : memref<1x128xf32, #tpu.memory_space<vmem>>, vector<1x128xf32>
    %21 = vector.broadcast %20 : vector<1x128xf32> to vector<256x128xf32>
    %22 = arith.addf %19, %21 : vector<256x128xf32>
    %23 = vector.shape_cast %22 : vector<256x128xf32> to vector<32x8x128xf32>
    %c0_18 = arith.constant 0 : index
    %c0_19 = arith.constant 0 : index
    %c0_20 = arith.constant 0 : index
    %24 = vector.load %arg9[%c0_18, %c0_19, %c0_20] : memref<32x8x128xf32, #tpu.memory_space<vmem>>, vector<32x8x128xf32>
    tpu.vector_store %arg9[%c0_18, %c0_19, %c0_20], %23 {strides = array<i32>} : memref<32x8x128xf32, #tpu.memory_space<vmem>>, vector<32x8x128xf32>,
    %c0_21 = arith.constant 0 : index
    %c0_22 = arith.constant 0 : index
    %25 = vector.load %arg2[%c0_21, %c0_22] : memref<32x128xf32, #tpu.memory_space<vmem>>, vector<32x128xf32>
    %26 = vector.shape_cast %25 : vector<32x128xf32> to vector<32x1x128xf32>
    %cst_23 = arith.constant 0.000000e+00 : f32
    %27 = vector.broadcast %cst_23 : f32 to vector<32x8x128xf32>
    %28 = arith.cmpf ogt, %23, %27 : vector<32x8x128xf32>
    %cst_24 = arith.constant 1.000000e+00 : f32
    %cst_25 = arith.constant 0.000000e+00 : f32
    %29 = vector.broadcast %cst_24 : f32 to vector<32x8x128xf32>
    %30 = vector.broadcast %cst_25 : f32 to vector<32x8x128xf32>
    %31 = arith.select %28, %29, %30 : vector<32x8x128xi1>, vector<32x8x128xf32>
    %32 = vector.broadcast %26 : vector<32x1x128xf32> to vector<32x8x128xf32>
    %33 = arith.subf %32, %31 : vector<32x8x128xf32>
    %34 = arith.mulf %33, %23 : vector<32x8x128xf32>
    %35 = math.absf %23 : vector<32x8x128xf32>
    %cst_26 = arith.constant 0.000000e+00 : f32
    %36 = vector.broadcast %cst_26 : f32 to vector<32x8x128xf32>
    %37 = arith.subf %36, %35 : vector<32x8x128xf32>
    %38 = math.exp %37 : vector<32x8x128xf32>
    %39 = math.log1p %38 : vector<32x8x128xf32>
    %40 = arith.subf %34, %39 : vector<32x8x128xf32>
    %cst_27 = arith.constant dense<0.000000e+00> : vector<32x8xf32>
    %41 = vector.multi_reduction <add>, %40, %cst_27 [2] : vector<32x8x128xf32> to vector<32x8xf32>
    %c0_28 = arith.constant 0 : index
    %c0_29 = arith.constant 0 : index
    %42 = vector.load %arg10[%c0_28, %c0_29] : memref<32x8xf32, #tpu.memory_space<vmem>>, vector<32x8xf32>
    tpu.vector_store %arg10[%c0_28, %c0_29], %41 {strides = array<i32>} : memref<32x8xf32, #tpu.memory_space<vmem>>, vector<32x8xf32>,
    return
  }
  func.func @transform_0(%arg0: i32) -> (i32, i32, i32) {
    %c0_i32 = arith.constant 0 : i32
    %c0_i32_0 = arith.constant 0 : i32
    %c0_i32_1 = arith.constant 0 : i32
    return %arg0, %c0_i32, %c0_i32_0 : i32, i32, i32
  }
  func.func @transform_1(%arg0: i32) -> (i32, i32) {
    %c0_i32 = arith.constant 0 : i32
    %c0_i32_0 = arith.constant 0 : i32
    return %arg0, %c0_i32 : i32, i32
  }
  func.func @transform_2(%arg0: i32) -> (i32, i32) {
    %c0_i32 = arith.constant 0 : i32
    %c0_i32_0 = arith.constant 0 : i32
    %c0_i32_1 = arith.constant 0 : i32
    return %c0_i32, %c0_i32_0 : i32, i32
  }
  func.func @transform_3(%arg0: i32) -> (i32, i32) {
    %c0_i32 = arith.constant 0 : i32
    %c0_i32_0 = arith.constant 0 : i32
    %c0_i32_1 = arith.constant 0 : i32
    return %c0_i32, %c0_i32_0 : i32, i32
  }
  func.func @transform_4(%arg0: i32) -> (i32, i32) {
    %c0_i32 = arith.constant 0 : i32
    %c0_i32_0 = arith.constant 0 : i32
    %c0_i32_1 = arith.constant 0 : i32
    return %c0_i32, %c0_i32_0 : i32, i32
  }
  func.func @transform_5(%arg0: i32) -> (i32, i32) {
    %c0_i32 = arith.constant 0 : i32
    %c0_i32_0 = arith.constant 0 : i32
    %c0_i32_1 = arith.constant 0 : i32
    return %c0_i32, %c0_i32_0 : i32, i32
  }
  func.func @transform_6(%arg0: i32) -> (i32, i32) {
    %c0_i32 = arith.constant 0 : i32
    %c0_i32_0 = arith.constant 0 : i32
    %c0_i32_1 = arith.constant 0 : i32
    return %c0_i32, %c0_i32_0 : i32, i32
  }
  func.func @transform_7(%arg0: i32) -> (i32, i32) {
    %c0_i32 = arith.constant 0 : i32
    %c0_i32_0 = arith.constant 0 : i32
    %c0_i32_1 = arith.constant 0 : i32
    return %c0_i32, %c0_i32_0 : i32, i32
  }
  func.func @transform_8(%arg0: i32) -> (i32, i32, i32) {
    %c0_i32 = arith.constant 0 : i32
    %c0_i32_0 = arith.constant 0 : i32
    %c0_i32_1 = arith.constant 0 : i32
    return %arg0, %c0_i32, %c0_i32_0 : i32, i32, i32
  }
  func.func @transform_9(%arg0: i32) -> (i32, i32) {
    %c0_i32 = arith.constant 0 : i32
    %c0_i32_0 = arith.constant 0 : i32
    return %arg0, %c0_i32 : i32, i32
  }
}

</mosaic_0001>

<llo_original>
// kernel: decoder_forward.1
$region0: #{decoder_forward.1}
  #allocation0 [shape = 'u32[]', space=smem, size = 0x4, offset = 0x4, fixed_abs, tag = 'smem constant byte address 0x4 - core index']
  #allocation1 [shape = 'u32[144,128]{1,0:T(1,128)}', space=vmem, size = 0x12000, scoped, tag = 'internal scratch']
  %s0 = inlined_call_operand.vmem [shape: bf16[32,8,16], index: 0, kind: input, shape index: {}]
  %s1 = inlined_call_operand.vmem [shape: f32[32,128], index: 1, kind: input, shape index: {}]
  %s2 = inlined_call_operand.vmem [shape: bf16[16,32], index: 2, kind: input, shape index: {}]
  %s3 = inlined_call_operand.vmem [shape: f32[1,32], index: 3, kind: input, shape index: {}]
  %s4 = inlined_call_operand.vmem [shape: bf16[32,32], index: 4, kind: input, shape index: {}]
  %s5 = inlined_call_operand.vmem [shape: f32[1,32], index: 5, kind: input, shape index: {}]
  %s6 = inlined_call_operand.vmem [shape: bf16[32,128], index: 6, kind: input, shape index: {}]
  %s7 = inlined_call_operand.vmem [shape: f32[1,128], index: 7, kind: input, shape index: {}]
  %s8 = inlined_call_operand.hbm [shape: f32[32,8,128], index: 8, kind: output, shape index: {0}]
  %s9 = inlined_call_operand.vmem [shape: f32[32,8], index: 9, kind: output, shape index: {1}]
  %10 = xla_tuple %s8, %s9
  %s11 = sld [smem:[#allocation0]]
  $region50: #{decoder_forward.1} parent=0
    _
  %s13 = ssub.s32 1, %s11
  %s14 = scalar_select 0, %s13, %s11
  $region1: #{decoder_forward.1} parent=0
    #allocation2 [shape = 'u8[131072]{0}', space=vmem, size = 0x20000, scoped, tag = 'output window, operand 0, single buffered']
    #allocation3 [shape = 's32[1]{0}', space=sflag, size = 0x4, scoped, tag = 'scoped memory for decoder_forward.1']
    %15 = vsyncpa [#allocation3], 0
    // Predicated region
    $region2: #{decoder_forward.1} parent=1 // pred_check
      _
    $region3: #{decoder_forward.1} parent=1 // pred_check_branch
      %17 = sbr.rel (0) target = $region5
    $region4: #{decoder_forward.1} parent=1 // pred_region
      _
    $region5: #{decoder_forward.1} parent=1 // pred_fallthru
      _
    // Predicated region
    $region6: #{decoder_forward.1} parent=1 // pred_check
      _
    $region7: #{decoder_forward.1} parent=1 // pred_check_branch
      %19 = sbr.rel (0) target = $region9
    $region8: #{decoder_forward.1} parent=1 // pred_region
      _
    $region9: #{decoder_forward.1} parent=1 // pred_fallthru
      _
    // Predicated region
    $region10: #{decoder_forward.1} parent=1 // pred_check
      _
    $region11: #{decoder_forward.1} parent=1 // pred_check_branch
      %21 = sbr.rel (0) target = $region13
    $region12: #{decoder_forward.1} parent=1 // pred_region
      _
    $region13: #{decoder_forward.1} parent=1 // pred_fallthru
      _
    // Predicated region
    $region14: #{decoder_forward.1} parent=1 // pred_check
      _
    $region15: #{decoder_forward.1} parent=1 // pred_check_branch
      %23 = sbr.rel (0) target = $region17
    $region16: #{decoder_forward.1} parent=1 // pred_region
      _
    $region17: #{decoder_forward.1} parent=1 // pred_fallthru
      _
    // Predicated region
    $region18: #{decoder_forward.1} parent=1 // pred_check
      _
    $region19: #{decoder_forward.1} parent=1 // pred_check_branch
      %25 = sbr.rel (0) target = $region21
    $region20: #{decoder_forward.1} parent=1 // pred_region
      _
    $region21: #{decoder_forward.1} parent=1 // pred_fallthru
      _
    // Predicated region
    $region22: #{decoder_forward.1} parent=1 // pred_check
      _
    $region23: #{decoder_forward.1} parent=1 // pred_check_branch
      %27 = sbr.rel (0) target = $region25
    $region24: #{decoder_forward.1} parent=1 // pred_region
      _
    $region25: #{decoder_forward.1} parent=1 // pred_fallthru
      _
    // Predicated region
    $region26: #{decoder_forward.1} parent=1 // pred_check
      _
    $region27: #{decoder_forward.1} parent=1 // pred_check_branch
      %29 = sbr.rel (0) target = $region29
    $region28: #{decoder_forward.1} parent=1 // pred_region
      _
    $region29: #{decoder_forward.1} parent=1 // pred_fallthru
      _
    // Predicated region
    $region30: #{decoder_forward.1} parent=1 // pred_check
      _
    $region31: #{decoder_forward.1} parent=1 // pred_check_branch
      %31 = sbr.rel (0) target = $region33
    $region32: #{decoder_forward.1} parent=1 // pred_region
      _
    $region33: #{decoder_forward.1} parent=1 // pred_fallthru
      _
    %v33 = vld [vmem:[%s0] sm:$0xf]
    %v34 = vld [vmem:[%s0 + $0x4] sm:$0xf]
    %v35 = vld [vmem:[%s0 + $0x8] sm:$0xf]
    %v36 = vld [vmem:[%s0 + $0xc] sm:$0xf]
    %v37 = vld [vmem:[%s0 + $0x10] sm:$0xf]
    %v38 = vld [vmem:[%s0 + $0x14] sm:$0xf]
    %v39 = vld [vmem:[%s0 + $0x18] sm:$0xf]
    %v40 = vld [vmem:[%s0 + $0x1c] sm:$0xf]
    %v41 = vld [vmem:[%s0 + $0x20] sm:$0xf]
    %v42 = vld [vmem:[%s0 + $0x24] sm:$0xf]
    %v43 = vld [vmem:[%s0 + $0x28] sm:$0xf]
    %v44 = vld [vmem:[%s0 + $0x2c] sm:$0xf]
    %v45 = vld [vmem:[%s0 + $0x30] sm:$0xf]
    %v46 = vld [vmem:[%s0 + $0x34] sm:$0xf]
    %v47 = vld [vmem:[%s0 + $0x38] sm:$0xf]
    %v48 = vld [vmem:[%s0 + $0x3c] sm:$0xf]
    %v49 = vld [vmem:[%s0 + $0x40] sm:$0xf]
    %v50 = vld [vmem:[%s0 + $0x44] sm:$0xf]
    %v51 = vld [vmem:[%s0 + $0x48] sm:$0xf]
    %v52 = vld [vmem:[%s0 + $0x4c] sm:$0xf]
    %v53 = vld [vmem:[%s0 + $0x50] sm:$0xf]
    %v54 = vld [vmem:[%s0 + $0x54] sm:$0xf]
    %v55 = vld [vmem:[%s0 + $0x58] sm:$0xf]
    %v56 = vld [vmem:[%s0 + $0x5c] sm:$0xf]
    %v57 = vld [vmem:[%s0 + $0x60] sm:$0xf]
    %v58 = vld [vmem:[%s0 + $0x64] sm:$0xf]
    %v59 = vld [vmem:[%s0 + $0x68] sm:$0xf]
    %v60 = vld [vmem:[%s0 + $0x6c] sm:$0xf]
    %v61 = vld [vmem:[%s0 + $0x70] sm:$0xf]
    %v62 = vld [vmem:[%s0 + $0x74] sm:$0xf]
    %v63 = vld [vmem:[%s0 + $0x78] sm:$0xf]
    %v64 = vld [vmem:[%s0 + $0x7c] sm:$0xf]
    %v65 = vld [vmem:[%s2] sm:$0xf]
    %v66 = vld [vmem:[%s2 + $0x4] sm:$0xf]
    %v67 = vld [vmem:[%s3] sm:$0x1]
    %v69 = vlaneseq
    %v70 = vshrl.u32 %v69, 7
    %v71 = vsub.s32 0, %v70
    %v72 = vrot.slane %v67, %v71
    %v106 = vunpack.c.l.b16 %v33
    %v107 = vunpack.c.l.b16 %v34
    %v108 = vunpack.c.l.b16 %v35
    %v109 = vunpack.c.l.b16 %v36
    %v110 = vunpack.c.l.b16 %v37
    %v111 = vunpack.c.l.b16 %v38
    %v112 = vunpack.c.l.b16 %v39
    %v113 = vunpack.c.l.b16 %v40
    %v114 = vunpack.c.l.b16 %v41
    %v115 = vunpack.c.l.b16 %v42
    %v116 = vunpack.c.l.b16 %v43
    %v117 = vunpack.c.l.b16 %v44
    %v118 = vunpack.c.l.b16 %v45
    %v119 = vunpack.c.l.b16 %v46
    %v120 = vunpack.c.l.b16 %v47
    %v121 = vunpack.c.l.b16 %v48
    %v122 = vunpack.c.l.b16 %v49
    %v123 = vunpack.c.l.b16 %v50
    %v124 = vunpack.c.l.b16 %v51
    %v125 = vunpack.c.l.b16 %v52
    %v126 = vunpack.c.l.b16 %v53
    %v127 = vunpack.c.l.b16 %v54
    %v128 = vunpack.c.l.b16 %v55
    %v129 = vunpack.c.l.b16 %v56
    %v130 = vunpack.c.l.b16 %v57
    %v131 = vunpack.c.l.b16 %v58
    %v132 = vunpack.c.l.b16 %v59
    %v133 = vunpack.c.l.b16 %v60
    %v134 = vunpack.c.l.b16 %v61
    %v135 = vunpack.c.l.b16 %v62
    %v136 = vunpack.c.l.b16 %v63
    %v137 = vunpack.c.l.b16 %v64
    %v138 = vpack.c.b16 %v107, %v106
    %v139 = vpack.c.b16 %v109, %v108
    %v140 = vpack.c.b16 %v111, %v110
    %v141 = vpack.c.b16 %v113, %v112
    %v142 = vpack.c.b16 %v115, %v114
    %v143 = vpack.c.b16 %v117, %v116
    %v144 = vpack.c.b16 %v119, %v118
    %v145 = vpack.c.b16 %v121, %v120
    %v146 = vpack.c.b16 %v123, %v122
    %v147 = vpack.c.b16 %v125, %v124
    %v148 = vpack.c.b16 %v127, %v126
    %v149 = vpack.c.b16 %v129, %v128
    %v150 = vpack.c.b16 %v131, %v130
    %v151 = vpack.c.b16 %v133, %v132
    %v152 = vpack.c.b16 %v135, %v134
    %v153 = vpack.c.b16 %v137, %v136
    %v156 = vunpack.c.l.b16 %v65
    %v157 = vunpack.c.l.b16 %v66
    %v158 = vpack.c.b16 %v157, %v156
    %vm160 = vcmask 130048
    %v162 = vsel %vm160, %v138, 0
    %v165 = vsel %vm160, %v139, 0
    %v168 = vsel %vm160, %v140, 0
    %v171 = vsel %vm160, %v141, 0
    %v174 = vsel %vm160, %v142, 0
    %v177 = vsel %vm160, %v143, 0
    %v180 = vsel %vm160, %v144, 0
    %v183 = vsel %vm160, %v145, 0
    %v186 = vsel %vm160, %v146, 0
    %v189 = vsel %vm160, %v147, 0
    %v192 = vsel %vm160, %v148, 0
    %v195 = vsel %vm160, %v149, 0
    %v198 = vsel %vm160, %v150, 0
    %v201 = vsel %vm160, %v151, 0
    %v204 = vsel %vm160, %v152, 0
    %v207 = vsel %vm160, %v153, 0
    %209 = vmatprep.subr.bf16.mxu0 0
    %210 = vmatpush1.bf16.msra.mxu0 0
    %211 = vmatprep.subr.bf16.mxu0 0
    %212 = vmatpush1.bf16.msra.mxu0 0
    %213 = vmatprep.subr.bf16.mxu0 0
    %214 = vmatpush1.bf16.msra.mxu0 0
    %215 = vmatprep.subr.bf16.mxu0 0
    %216 = vmatpush1.bf16.msra.mxu0 0
    %217 = vmatprep.subr.bf16.mxu0 0
    %218 = vmatpush1.bf16.msra.mxu0 0
    %219 = vmatprep.subr.bf16.mxu0 0
    %220 = vmatpush1.bf16.msra.mxu0 0
    %221 = vmatprep.subr.bf16.mxu0 0
    %222 = vmatpush1.bf16.msra.mxu0 0
    %223 = vmatprep.subr.bf16.mxu0 0
    %224 = vmatpush1.bf16.msra.mxu0 %v158
    %225 = vmatprep.subr.bf16.mxu0 0
    %226 = vmatpush2.bf16.msra.mxu0 0
    %227 = vmatprep.subr.bf16.mxu0 0
    %228 = vmatpush2.bf16.msra.mxu0 0
    %229 = vmatprep.subr.bf16.mxu0 0
    %230 = vmatpush2.bf16.msra.mxu0 0
    %231 = vmatprep.subr.bf16.mxu0 0
    %232 = vmatpush2.bf16.msra.mxu0 0
    %233 = vmatprep.subr.bf16.mxu0 0
    %234 = vmatpush2.bf16.msra.mxu0 0
    %235 = vmatprep.subr.bf16.mxu0 0
    %236 = vmatpush2.bf16.msra.mxu0 0
    %237 = vmatprep.subr.bf16.mxu0 0
    %238 = vmatpush2.bf16.msra.mxu0 0
    %239 = vmatprep.subr.bf16.mxu0 0
    %240 = vmatpush2.bf16.msra.mxu0 0
    %241 = vmatprep.mubr.bf16.mxu0 0
    %242 = vmatmul.mubr.bf16.gmra.mxu0 %v162
    %v243 = vpop.f32.mrf.mxu0
    %v244 = vadd.f32 %v72, %v243
    %v245 = vpop.f32.mrf.mxu0
    %v246 = vpop.f32.mrf.mxu0
    %v247 = vadd.f32 %v72, %v246
    %v248 = vpop.f32.mrf.mxu0
    %249 = vmatprep.mubr.bf16.mxu0 0
    %250 = vmatmul.mubr.bf16.gmra.mxu0 %v165
    %v251 = vpop.f32.mrf.mxu0
    %v252 = vadd.f32 %v72, %v251
    %v253 = vpop.f32.mrf.mxu0
    %v254 = vpop.f32.mrf.mxu0
    %v255 = vadd.f32 %v72, %v254
    %v256 = vpop.f32.mrf.mxu0
    %257 = vmatprep.mubr.bf16.mxu0 0
    %258 = vmatmul.mubr.bf16.gmra.mxu0 %v168
    %v259 = vpop.f32.mrf.mxu0
    %v260 = vadd.f32 %v72, %v259
    %v261 = vpop.f32.mrf.mxu0
    %v262 = vpop.f32.mrf.mxu0
    %v263 = vadd.f32 %v72, %v262
    %v264 = vpop.f32.mrf.mxu0
    %265 = vmatprep.mubr.bf16.mxu0 0
    %266 = vmatmul.mubr.bf16.gmra.mxu0 %v171
    %v267 = vpop.f32.mrf.mxu0
    %v268 = vadd.f32 %v72, %v267
    %v269 = vpop.f32.mrf.mxu0
    %v270 = vpop.f32.mrf.mxu0
    %v271 = vadd.f32 %v72, %v270
    %v272 = vpop.f32.mrf.mxu0
    %273 = vmatprep.mubr.bf16.mxu0 0
    %274 = vmatmul.mubr.bf16.gmra.mxu0 %v174
    %v275 = vpop.f32.mrf.mxu0
    %v276 = vadd.f32 %v72, %v275
    %v277 = vpop.f32.mrf.mxu0
    %v278 = vpop.f32.mrf.mxu0
    %v279 = vadd.f32 %v72, %v278
    %v280 = vpop.f32.mrf.mxu0
    %281 = vmatprep.mubr.bf16.mxu0 0
    %282 = vmatmul.mubr.bf16.gmra.mxu0 %v177
    %v283 = vpop.f32.mrf.mxu0
    %v284 = vadd.f32 %v72, %v283
    %v285 = vpop.f32.mrf.mxu0
    %v286 = vpop.f32.mrf.mxu0
    %v287 = vadd.f32 %v72, %v286
    %v288 = vpop.f32.mrf.mxu0
    %289 = vmatprep.mubr.bf16.mxu0 0
    %290 = vmatmul.mubr.bf16.gmra.mxu0 %v180
    %v291 = vpop.f32.mrf.mxu0
    %v292 = vadd.f32 %v72, %v291
    %v293 = vpop.f32.mrf.mxu0
    %v294 = vpop.f32.mrf.mxu0
    %v295 = vadd.f32 %v72, %v294
    %v296 = vpop.f32.mrf.mxu0
    %297 = vmatprep.mubr.bf16.mxu0 0
    %298 = vmatmul.mubr.bf16.gmra.mxu0 %v183
    %v299 = vpop.f32.mrf.mxu0
    %v300 = vadd.f32 %v72, %v299
    %v301 = vpop.f32.mrf.mxu0
    %v302 = vpop.f32.mrf.mxu0
    %v303 = vadd.f32 %v72, %v302
    %v304 = vpop.f32.mrf.mxu0
    %305 = vmatprep.mubr.bf16.mxu0 0
    %306 = vmatmul.mubr.bf16.gmra.mxu0 %v186
    %v307 = vpop.f32.mrf.mxu0
    %v308 = vadd.f32 %v72, %v307
    %v309 = vpop.f32.mrf.mxu0
    %v310 = vpop.f32.mrf.mxu0
    %v311 = vadd.f32 %v72, %v310
    %v312 = vpop.f32.mrf.mxu0
    %313 = vmatprep.mubr.bf16.mxu0 0
    %314 = vmatmul.mubr.bf16.gmra.mxu0 %v189
    %v315 = vpop.f32.mrf.mxu0
    %v316 = vadd.f32 %v72, %v315
    %v317 = vpop.f32.mrf.mxu0
    %v318 = vpop.f32.mrf.mxu0
    %v319 = vadd.f32 %v72, %v318
    %v320 = vpop.f32.mrf.mxu0
    %321 = vmatprep.mubr.bf16.mxu0 0
    %322 = vmatmul.mubr.bf16.gmra.mxu0 %v192
    %v323 = vpop.f32.mrf.mxu0
    %v324 = vadd.f32 %v72, %v323
    %v325 = vpop.f32.mrf.mxu0
    %v326 = vpop.f32.mrf.mxu0
    %v327 = vadd.f32 %v72, %v326
    %v328 = vpop.f32.mrf.mxu0
    %329 = vmatprep.mubr.bf16.mxu0 0
    %330 = vmatmul.mubr.bf16.gmra.mxu0 %v195
    %v331 = vpop.f32.mrf.mxu0
    %v332 = vadd.f32 %v72, %v331
    %v333 = vpop.f32.mrf.mxu0
    %v334 = vpop.f32.mrf.mxu0
    %v335 = vadd.f32 %v72, %v334
    %v336 = vpop.f32.mrf.mxu0
    %337 = vmatprep.mubr.bf16.mxu0 0
    %338 = vmatmul.mubr.bf16.gmra.mxu0 %v198
    %v339 = vpop.f32.mrf.mxu0
    %v340 = vadd.f32 %v72, %v339
    %v341 = vpop.f32.mrf.mxu0
    %v342 = vpop.f32.mrf.mxu0
    %v343 = vadd.f32 %v72, %v342
    %v344 = vpop.f32.mrf.mxu0
    %345 = vmatprep.mubr.bf16.mxu0 0
    %346 = vmatmul.mubr.bf16.gmra.mxu0 %v201
    %v347 = vpop.f32.mrf.mxu0
    %v348 = vadd.f32 %v72, %v347
    %v349 = vpop.f32.mrf.mxu0
    %v350 = vpop.f32.mrf.mxu0
    %v351 = vadd.f32 %v72, %v350
    %v352 = vpop.f32.mrf.mxu0
    %353 = vmatprep.mubr.bf16.mxu0 0
    %354 = vmatmul.mubr.bf16.gmra.mxu0 %v204
    %v355 = vpop.f32.mrf.mxu0
    %v356 = vadd.f32 %v72, %v355
    %v357 = vpop.f32.mrf.mxu0
    %v358 = vpop.f32.mrf.mxu0
    %v359 = vadd.f32 %v72, %v358
    %v360 = vpop.f32.mrf.mxu0
    %361 = vmatprep.mubr.bf16.mxu0 0
    %362 = vmatmul.mubr.bf16.gmra.mxu0 %v207
    %v363 = vpop.f32.mrf.mxu0
    %v364 = vadd.f32 %v72, %v363
    %v365 = vpop.f32.mrf.mxu0
    %v366 = vpop.f32.mrf.mxu0
    %v367 = vadd.f32 %v72, %v366
    %v368 = vpop.f32.mrf.mxu0
    %369 = vdwg.mxu0
    %v370 = vmax.f32 %v244, 0.0
    %v371 = vmax.f32 %v247, 0.0
    %v372 = vmax.f32 %v252, 0.0
    %v373 = vmax.f32 %v255, 0.0
    %v374 = vmax.f32 %v260, 0.0
    %v375 = vmax.f32 %v263, 0.0
    %v376 = vmax.f32 %v268, 0.0
    %v377 = vmax.f32 %v271, 0.0
    %v378 = vmax.f32 %v276, 0.0
    %v379 = vmax.f32 %v279, 0.0
    %v380 = vmax.f32 %v284, 0.0
    %v381 = vmax.f32 %v287, 0.0
    %v382 = vmax.f32 %v292, 0.0
    %v383 = vmax.f32 %v295, 0.0
    %v384 = vmax.f32 %v300, 0.0
    %v385 = vmax.f32 %v303, 0.0
    %v386 = vmax.f32 %v308, 0.0
    %v387 = vmax.f32 %v311, 0.0
    %v388 = vmax.f32 %v316, 0.0
    %v389 = vmax.f32 %v319, 0.0
    %v390 = vmax.f32 %v324, 0.0
    %v391 = vmax.f32 %v327, 0.0
    %v392 = vmax.f32 %v332, 0.0
    %v393 = vmax.f32 %v335, 0.0
    %v394 = vmax.f32 %v340, 0.0
    %v395 = vmax.f32 %v343, 0.0
    %v396 = vmax.f32 %v348, 0.0
    %v397 = vmax.f32 %v351, 0.0
    %v398 = vmax.f32 %v356, 0.0
    %v399 = vmax.f32 %v359, 0.0
    %v400 = vmax.f32 %v364, 0.0
    %v401 = vmax.f32 %v367, 0.0
    %v402 = vpack.c.bf16 %v371, %v370
    %v403 = vpack.c.bf16 %v373, %v372
    %v404 = vpack.c.bf16 %v375, %v374
    %v405 = vpack.c.bf16 %v377, %v376
    %v406 = vpack.c.bf16 %v379, %v378
    %v407 = vpack.c.bf16 %v381, %v380
    %v408 = vpack.c.bf16 %v383, %v382
    %v409 = vpack.c.bf16 %v385, %v384
    %v410 = vpack.c.bf16 %v387, %v386
    %v411 = vpack.c.bf16 %v389, %v388
    %v412 = vpack.c.bf16 %v391, %v390
    %v413 = vpack.c.bf16 %v393, %v392
    %v414 = vpack.c.bf16 %v395, %v394
    %v415 = vpack.c.bf16 %v397, %v396
    %v416 = vpack.c.bf16 %v399, %v398
    %v417 = vpack.c.bf16 %v401, %v400
    %v418 = vld [vmem:[%s4] sm:$0xf]
    %v419 = vld [vmem:[%s4 + $0x4] sm:$0xf]
    %v420 = vld [vmem:[%s4 + $0x8] sm:$0xf]
    %v421 = vld [vmem:[%s4 + $0xc] sm:$0xf]
    %v422 = vld [vmem:[%s5] sm:$0x1]
    %v424 = vlaneseq
    %v425 = vshrl.u32 %v424, 7
    %v426 = vsub.s32 0, %v425
    %v427 = vrot.slane %v422, %v426
    %v433 = vunpack.c.l.b16 %v418
    %v434 = vunpack.c.l.b16 %v419
    %v435 = vunpack.c.l.b16 %v420
    %v436 = vunpack.c.l.b16 %v421
    %v437 = vpack.c.b16 %v434, %v433
    %v438 = vpack.c.b16 %v436, %v435
    %vm441 = vcmask 261120
    %v443 = vsel %vm441, %v402, 0
    %v446 = vsel %vm441, %v403, 0
    %v449 = vsel %vm441, %v404, 0
    %v452 = vsel %vm441, %v405, 0
    %v455 = vsel %vm441, %v406, 0
    %v458 = vsel %vm441, %v407, 0
    %v461 = vsel %vm441, %v408, 0
    %v464 = vsel %vm441, %v409, 0
    %v467 = vsel %vm441, %v410, 0
    %v470 = vsel %vm441, %v411, 0
    %v473 = vsel %vm441, %v412, 0
    %v476 = vsel %vm441, %v413, 0
    %v479 = vsel %vm441, %v414, 0
    %v482 = vsel %vm441, %v415, 0
    %v485 = vsel %vm441, %v416, 0
    %v488 = vsel %vm441, %v417, 0
    %490 = vmatprep.subr.bf16.mxu0 0
    %491 = vmatpush1.bf16.msra.mxu0 0
    %492 = vmatprep.subr.bf16.mxu0 0
    %493 = vmatpush1.bf16.msra.mxu0 0
    %494 = vmatprep.subr.bf16.mxu0 0
    %495 = vmatpush1.bf16.msra.mxu0 0
    %496 = vmatprep.subr.bf16.mxu0 0
    %497 = vmatpush1.bf16.msra.mxu0 0
    %498 = vmatprep.subr.bf16.mxu0 0
    %499 = vmatpush1.bf16.msra.mxu0 0
    %500 = vmatprep.subr.bf16.mxu0 0
    %501 = vmatpush1.bf16.msra.mxu0 0
    %502 = vmatprep.subr.bf16.mxu0 0
    %503 = vmatpush1.bf16.msra.mxu0 %v438
    %504 = vmatprep.subr.bf16.mxu0 0
    %505 = vmatpush1.bf16.msra.mxu0 %v437
    %506 = vmatprep.subr.bf16.mxu0 0
    %507 = vmatpush2.bf16.msra.mxu0 0
    %508 = vmatprep.subr.bf16.mxu0 0
    %509 = vmatpush2.bf16.msra.mxu0 0
    %510 = vmatprep.subr.bf16.mxu0 0
    %511 = vmatpush2.bf16.msra.mxu0 0
    %512 = vmatprep.subr.bf16.mxu0 0
    %513 = vmatpush2.bf16.msra.mxu0 0
    %514 = vmatprep.subr.bf16.mxu0 0
    %515 = vmatpush2.bf16.msra.mxu0 0
    %516 = vmatprep.subr.bf16.mxu0 0
    %517 = vmatpush2.bf16.msra.mxu0 0
    %518 = vmatprep.subr.bf16.mxu0 0
    %519 = vmatpush2.bf16.msra.mxu0 0
    %520 = vmatprep.subr.bf16.mxu0 0
    %521 = vmatpush2.bf16.msra.mxu0 0
    %522 = vmatprep.mubr.bf16.mxu0 0
    %523 = vmatmul.mubr.bf16.gmra.mxu0 %v443
    %v524 = vpop.f32.mrf.mxu0
    %v525 = vadd.f32 %v427, %v524
    %v526 = vpop.f32.mrf.mxu0
    %v527 = vpop.f32.mrf.mxu0
    %v528 = vadd.f32 %v427, %v527
    %v529 = vpop.f32.mrf.mxu0
    %530 = vmatprep.mubr.bf16.mxu0 0
    %531 = vmatmul.mubr.bf16.gmra.mxu0 %v446
    %v532 = vpop.f32.mrf.mxu0
    %v533 = vadd.f32 %v427, %v532
    %v534 = vpop.f32.mrf.mxu0
    %v535 = vpop.f32.mrf.mxu0
    %v536 = vadd.f32 %v427, %v535
    %v537 = vpop.f32.mrf.mxu0
    %538 = vmatprep.mubr.bf16.mxu0 0
    %539 = vmatmul.mubr.bf16.gmra.mxu0 %v449
    %v540 = vpop.f32.mrf.mxu0
    %v541 = vadd.f32 %v427, %v540
    %v542 = vpop.f32.mrf.mxu0
    %v543 = vpop.f32.mrf.mxu0
    %v544 = vadd.f32 %v427, %v543
    %v545 = vpop.f32.mrf.mxu0
    %546 = vmatprep.mubr.bf16.mxu0 0
    %547 = vmatmul.mubr.bf16.gmra.mxu0 %v452
    %v548 = vpop.f32.mrf.mxu0
    %v549 = vadd.f32 %v427, %v548
    %v550 = vpop.f32.mrf.mxu0
    %v551 = vpop.f32.mrf.mxu0
    %v552 = vadd.f32 %v427, %v551
    %v553 = vpop.f32.mrf.mxu0
    %554 = vmatprep.mubr.bf16.mxu0 0
    %555 = vmatmul.mubr.bf16.gmra.mxu0 %v455
    %v556 = vpop.f32.mrf.mxu0
    %v557 = vadd.f32 %v427, %v556
    %v558 = vpop.f32.mrf.mxu0
    %v559 = vpop.f32.mrf.mxu0
    %v560 = vadd.f32 %v427, %v559
    %v561 = vpop.f32.mrf.mxu0
    %562 = vmatprep.mubr.bf16.mxu0 0
    %563 = vmatmul.mubr.bf16.gmra.mxu0 %v458
    %v564 = vpop.f32.mrf.mxu0
    %v565 = vadd.f32 %v427, %v564
    %v566 = vpop.f32.mrf.mxu0
    %v567 = vpop.f32.mrf.mxu0
    %v568 = vadd.f32 %v427, %v567
    %v569 = vpop.f32.mrf.mxu0
    %570 = vmatprep.mubr.bf16.mxu0 0
    %571 = vmatmul.mubr.bf16.gmra.mxu0 %v461
    %v572 = vpop.f32.mrf.mxu0
    %v573 = vadd.f32 %v427, %v572
    %v574 = vpop.f32.mrf.mxu0
    %v575 = vpop.f32.mrf.mxu0
    %v576 = vadd.f32 %v427, %v575
    %v577 = vpop.f32.mrf.mxu0
    %578 = vmatprep.mubr.bf16.mxu0 0
    %579 = vmatmul.mubr.bf16.gmra.mxu0 %v464
    %v580 = vpop.f32.mrf.mxu0
    %v581 = vadd.f32 %v427, %v580
    %v582 = vpop.f32.mrf.mxu0
    %v583 = vpop.f32.mrf.mxu0
    %v584 = vadd.f32 %v427, %v583
    %v585 = vpop.f32.mrf.mxu0
    %586 = vmatprep.mubr.bf16.mxu0 0
    %587 = vmatmul.mubr.bf16.gmra.mxu0 %v467
    %v588 = vpop.f32.mrf.mxu0
    %v589 = vadd.f32 %v427, %v588
    %v590 = vpop.f32.mrf.mxu0
    %v591 = vpop.f32.mrf.mxu0
    %v592 = vadd.f32 %v427, %v591
    %v593 = vpop.f32.mrf.mxu0
    %594 = vmatprep.mubr.bf16.mxu0 0
    %595 = vmatmul.mubr.bf16.gmra.mxu0 %v470
    %v596 = vpop.f32.mrf.mxu0
    %v597 = vadd.f32 %v427, %v596
    %v598 = vpop.f32.mrf.mxu0
    %v599 = vpop.f32.mrf.mxu0
    %v600 = vadd.f32 %v427, %v599
    %v601 = vpop.f32.mrf.mxu0
    %602 = vmatprep.mubr.bf16.mxu0 0
    %603 = vmatmul.mubr.bf16.gmra.mxu0 %v473
    %v604 = vpop.f32.mrf.mxu0
    %v605 = vadd.f32 %v427, %v604
    %v606 = vpop.f32.mrf.mxu0
    %v607 = vpop.f32.mrf.mxu0
    %v608 = vadd.f32 %v427, %v607
    %v609 = vpop.f32.mrf.mxu0
    %610 = vmatprep.mubr.bf16.mxu0 0
    %611 = vmatmul.mubr.bf16.gmra.mxu0 %v476
    %v612 = vpop.f32.mrf.mxu0
    %v613 = vadd.f32 %v427, %v612
    %v614 = vpop.f32.mrf.mxu0
    %v615 = vpop.f32.mrf.mxu0
    %v616 = vadd.f32 %v427, %v615
    %v617 = vpop.f32.mrf.mxu0
    %618 = vmatprep.mubr.bf16.mxu0 0
    %619 = vmatmul.mubr.bf16.gmra.mxu0 %v479
    %v620 = vpop.f32.mrf.mxu0
    %v621 = vadd.f32 %v427, %v620
    %v622 = vpop.f32.mrf.mxu0
    %v623 = vpop.f32.mrf.mxu0
    %v624 = vadd.f32 %v427, %v623
    %v625 = vpop.f32.mrf.mxu0
    %626 = vmatprep.mubr.bf16.mxu0 0
    %627 = vmatmul.mubr.bf16.gmra.mxu0 %v482
    %v628 = vpop.f32.mrf.mxu0
    %v629 = vadd.f32 %v427, %v628
    %v630 = vpop.f32.mrf.mxu0
    %v631 = vpop.f32.mrf.mxu0
    %v632 = vadd.f32 %v427, %v631
    %v633 = vpop.f32.mrf.mxu0
    %634 = vmatprep.mubr.bf16.mxu0 0
    %635 = vmatmul.mubr.bf16.gmra.mxu0 %v485
    %v636 = vpop.f32.mrf.mxu0
    %v637 = vadd.f32 %v427, %v636
    %v638 = vpop.f32.mrf.mxu0
    %v639 = vpop.f32.mrf.mxu0
    %v640 = vadd.f32 %v427, %v639
    %v641 = vpop.f32.mrf.mxu0
    %642 = vmatprep.mubr.bf16.mxu0 0
    %643 = vmatmul.mubr.bf16.gmra.mxu0 %v488
    %v644 = vpop.f32.mrf.mxu0
    %v645 = vadd.f32 %v427, %v644
    %v646 = vpop.f32.mrf.mxu0
    %v647 = vpop.f32.mrf.mxu0
    %v648 = vadd.f32 %v427, %v647
    %v649 = vpop.f32.mrf.mxu0
    %650 = vdwg.mxu0
    %v651 = vmax.f32 %v525, 0.0
    %v652 = vmax.f32 %v528, 0.0
    %v653 = vmax.f32 %v533, 0.0
    %v654 = vmax.f32 %v536, 0.0
    %v655 = vmax.f32 %v541, 0.0
    %v656 = vmax.f32 %v544, 0.0
    %v657 = vmax.f32 %v549, 0.0
    %v658 = vmax.f32 %v552, 0.0
    %v659 = vmax.f32 %v557, 0.0
    %v660 = vmax.f32 %v560, 0.0
    %v661 = vmax.f32 %v565, 0.0
    %v662 = vmax.f32 %v568, 0.0
    %v663 = vmax.f32 %v573, 0.0
    %v664 = vmax.f32 %v576, 0.0
    %v665 = vmax.f32 %v581, 0.0
    %v666 = vmax.f32 %v584, 0.0
    %v667 = vmax.f32 %v589, 0.0
    %v668 = vmax.f32 %v592, 0.0
    %v669 = vmax.f32 %v597, 0.0
    %v670 = vmax.f32 %v600, 0.0
    %v671 = vmax.f32 %v605, 0.0
    %v672 = vmax.f32 %v608, 0.0
    %v673 = vmax.f32 %v613, 0.0
    %v674 = vmax.f32 %v616, 0.0
    %v675 = vmax.f32 %v621, 0.0
    %v676 = vmax.f32 %v624, 0.0
    %v677 = vmax.f32 %v629, 0.0
    %v678 = vmax.f32 %v632, 0.0
    %v679 = vmax.f32 %v637, 0.0
    %v680 = vmax.f32 %v640, 0.0
    %v681 = vmax.f32 %v645, 0.0
    %v682 = vmax.f32 %v648, 0.0
    %v683 = vpack.c.bf16 %v652, %v651
    %v684 = vpack.c.bf16 %v654, %v653
    %v685 = vpack.c.bf16 %v656, %v655
    %v686 = vpack.c.bf16 %v658, %v657
    %v687 = vpack.c.bf16 %v660, %v659
    %v688 = vpack.c.bf16 %v662, %v661
    %v689 = vpack.c.bf16 %v664, %v663
    %v690 = vpack.c.bf16 %v666, %v665
    %v691 = vpack.c.bf16 %v668, %v667
    %v692 = vpack.c.bf16 %v670, %v669
    %v693 = vpack.c.bf16 %v672, %v671
    %v694 = vpack.c.bf16 %v674, %v673
    %v695 = vpack.c.bf16 %v676, %v675
    %v696 = vpack.c.bf16 %v678, %v677
    %v697 = vpack.c.bf16 %v680, %v679
    %v698 = vpack.c.bf16 %v682, %v681
    %v699 = vld [vmem:[%s6] sm:$0xf]
    %v700 = vld [vmem:[%s6 + $0x4] sm:$0xf]
    %v701 = vld [vmem:[%s6 + $0x8] sm:$0xf]
    %v702 = vld [vmem:[%s6 + $0xc] sm:$0xf]
    %v703 = vld [vmem:[%s7] sm:$0x1]
    %v705 = vlaneseq
    %v706 = vshrl.u32 %v705, 7
    %v707 = vsub.s32 0, %v706
    %v708 = vrot.slane %v703, %v707
    %v714 = vunpack.c.l.b16 %v699
    %v715 = vunpack.c.l.b16 %v700
    %v716 = vunpack.c.l.b16 %v701
    %v717 = vunpack.c.l.b16 %v702
    %v718 = vpack.c.b16 %v715, %v714
    %v719 = vpack.c.b16 %v717, %v716
    %v723 = vsel %vm441, %v683, 0
    %v726 = vsel %vm441, %v684, 0
    %v729 = vsel %vm441, %v685, 0
    %v732 = vsel %vm441, %v686, 0
    %v735 = vsel %vm441, %v687, 0
    %v738 = vsel %vm441, %v688, 0
    %v741 = vsel %vm441, %v689, 0
    %v744 = vsel %vm441, %v690, 0
    %v747 = vsel %vm441, %v691, 0
    %v750 = vsel %vm441, %v692, 0
    %v753 = vsel %vm441, %v693, 0
    %v756 = vsel %vm441, %v694, 0
    %v759 = vsel %vm441, %v695, 0
    %v762 = vsel %vm441, %v696, 0
    %v765 = vsel %vm441, %v697, 0
    %v768 = vsel %vm441, %v698, 0
    %770 = vmatprep.subr.bf16.mxu0 0
    %771 = vmatpush1.bf16.msra.mxu0 0
    %772 = vmatprep.subr.bf16.mxu0 0
    %773 = vmatpush1.bf16.msra.mxu0 0
    %774 = vmatprep.subr.bf16.mxu0 0
    %775 = vmatpush1.bf16.msra.mxu0 0
    %776 = vmatprep.subr.bf16.mxu0 0
    %777 = vmatpush1.bf16.msra.mxu0 0
    %778 = vmatprep.subr.bf16.mxu0 0
    %779 = vmatpush1.bf16.msra.mxu0 0
    %780 = vmatprep.subr.bf16.mxu0 0
    %781 = vmatpush1.bf16.msra.mxu0 0
    %782 = vmatprep.subr.bf16.mxu0 0
    %783 = vmatpush1.bf16.msra.mxu0 %v719
    %784 = vmatprep.subr.bf16.mxu0 0
    %785 = vmatpush1.bf16.msra.mxu0 %v718
    %786 = vmatprep.subr.bf16.mxu0 0
    %787 = vmatpush2.bf16.msra.mxu0 0
    %788 = vmatprep.subr.bf16.mxu0 0
    %789 = vmatpush2.bf16.msra.mxu0 0
    %790 = vmatprep.subr.bf16.mxu0 0
    %791 = vmatpush2.bf16.msra.mxu0 0
    %792 = vmatprep.subr.bf16.mxu0 0
    %793 = vmatpush2.bf16.msra.mxu0 0
    %794 = vmatprep.subr.bf16.mxu0 0
    %795 = vmatpush2.bf16.msra.mxu0 0
    %796 = vmatprep.subr.bf16.mxu0 0
    %797 = vmatpush2.bf16.msra.mxu0 0
    %798 = vmatprep.subr.bf16.mxu0 0
    %799 = vmatpush2.bf16.msra.mxu0 0
    %800 = vmatprep.subr.bf16.mxu0 0
    %801 = vmatpush2.bf16.msra.mxu0 0
    %802 = vmatprep.mubr.bf16.mxu0 0
    %803 = vmatmul.mubr.bf16.gmra.mxu0 %v723
    %v804 = vpop.f32.mrf.mxu0
    %v805 = vadd.f32 %v708, %v804
    %v806 = vpop.f32.mrf.mxu0
    %v807 = vpop.f32.mrf.mxu0
    %v808 = vadd.f32 %v708, %v807
    %v809 = vpop.f32.mrf.mxu0
    %810 = vmatprep.mubr.bf16.mxu0 0
    %811 = vmatmul.mubr.bf16.gmra.mxu0 %v726
    %v812 = vpop.f32.mrf.mxu0
    %v813 = vadd.f32 %v708, %v812
    %v814 = vpop.f32.mrf.mxu0
    %v815 = vpop.f32.mrf.mxu0
    %v816 = vadd.f32 %v708, %v815
    %v817 = vpop.f32.mrf.mxu0
    %818 = vmatprep.mubr.bf16.mxu0 0
    %819 = vmatmul.mubr.bf16.gmra.mxu0 %v729
    %v820 = vpop.f32.mrf.mxu0
    %v821 = vadd.f32 %v708, %v820
    %v822 = vpop.f32.mrf.mxu0
    %v823 = vpop.f32.mrf.mxu0
    %v824 = vadd.f32 %v708, %v823
    %v825 = vpop.f32.mrf.mxu0
    %826 = vmatprep.mubr.bf16.mxu0 0
    %827 = vmatmul.mubr.bf16.gmra.mxu0 %v732
    %v828 = vpop.f32.mrf.mxu0
    %v829 = vadd.f32 %v708, %v828
    %v830 = vpop.f32.mrf.mxu0
    %v831 = vpop.f32.mrf.mxu0
    %v832 = vadd.f32 %v708, %v831
    %v833 = vpop.f32.mrf.mxu0
    %834 = vmatprep.mubr.bf16.mxu0 0
    %835 = vmatmul.mubr.bf16.gmra.mxu0 %v735
    %v836 = vpop.f32.mrf.mxu0
    %v837 = vadd.f32 %v708, %v836
    %v838 = vpop.f32.mrf.mxu0
    %v839 = vpop.f32.mrf.mxu0
    %v840 = vadd.f32 %v708, %v839
    %v841 = vpop.f32.mrf.mxu0
    %842 = vmatprep.mubr.bf16.mxu0 0
    %843 = vmatmul.mubr.bf16.gmra.mxu0 %v738
    %v844 = vpop.f32.mrf.mxu0
    %v845 = vadd.f32 %v708, %v844
    %v846 = vpop.f32.mrf.mxu0
    %v847 = vpop.f32.mrf.mxu0
    %v848 = vadd.f32 %v708, %v847
    %v849 = vpop.f32.mrf.mxu0
    %850 = vmatprep.mubr.bf16.mxu0 0
    %851 = vmatmul.mubr.bf16.gmra.mxu0 %v741
    %v852 = vpop.f32.mrf.mxu0
    %v853 = vadd.f32 %v708, %v852
    %v854 = vpop.f32.mrf.mxu0
    %v855 = vpop.f32.mrf.mxu0
    %v856 = vadd.f32 %v708, %v855
    %v857 = vpop.f32.mrf.mxu0
    %858 = vmatprep.mubr.bf16.mxu0 0
    %859 = vmatmul.mubr.bf16.gmra.mxu0 %v744
    %v860 = vpop.f32.mrf.mxu0
    %v861 = vadd.f32 %v708, %v860
    %v862 = vpop.f32.mrf.mxu0
    %v863 = vpop.f32.mrf.mxu0
    %v864 = vadd.f32 %v708, %v863
    %v865 = vpop.f32.mrf.mxu0
    %866 = vmatprep.mubr.bf16.mxu0 0
    %867 = vmatmul.mubr.bf16.gmra.mxu0 %v747
    %v868 = vpop.f32.mrf.mxu0
    %v869 = vadd.f32 %v708, %v868
    %v870 = vpop.f32.mrf.mxu0
    %v871 = vpop.f32.mrf.mxu0
    %v872 = vadd.f32 %v708, %v871
    %v873 = vpop.f32.mrf.mxu0
    %874 = vmatprep.mubr.bf16.mxu0 0
    %875 = vmatmul.mubr.bf16.gmra.mxu0 %v750
    %v876 = vpop.f32.mrf.mxu0
    %v877 = vadd.f32 %v708, %v876
    %v878 = vpop.f32.mrf.mxu0
    %v879 = vpop.f32.mrf.mxu0
    %v880 = vadd.f32 %v708, %v879
    %v881 = vpop.f32.mrf.mxu0
    %882 = vmatprep.mubr.bf16.mxu0 0
    %883 = vmatmul.mubr.bf16.gmra.mxu0 %v753
    %v884 = vpop.f32.mrf.mxu0
    %v885 = vadd.f32 %v708, %v884
    %v886 = vpop.f32.mrf.mxu0
    %v887 = vpop.f32.mrf.mxu0
    %v888 = vadd.f32 %v708, %v887
    %v889 = vpop.f32.mrf.mxu0
    %890 = vmatprep.mubr.bf16.mxu0 0
    %891 = vmatmul.mubr.bf16.gmra.mxu0 %v756
    %v892 = vpop.f32.mrf.mxu0
    %v893 = vadd.f32 %v708, %v892
    %v894 = vpop.f32.mrf.mxu0
    %v895 = vpop.f32.mrf.mxu0
    %v896 = vadd.f32 %v708, %v895
    %v897 = vpop.f32.mrf.mxu0
    %898 = vmatprep.mubr.bf16.mxu0 0
    %899 = vmatmul.mubr.bf16.gmra.mxu0 %v759
    %v900 = vpop.f32.mrf.mxu0
    %v901 = vadd.f32 %v708, %v900
    %v902 = vpop.f32.mrf.mxu0
    %v903 = vpop.f32.mrf.mxu0
    %v904 = vadd.f32 %v708, %v903
    %v905 = vpop.f32.mrf.mxu0
    %906 = vmatprep.mubr.bf16.mxu0 0
    %907 = vmatmul.mubr.bf16.gmra.mxu0 %v762
    %v908 = vpop.f32.mrf.mxu0
    %v909 = vadd.f32 %v708, %v908
    %v910 = vpop.f32.mrf.mxu0
    %v911 = vpop.f32.mrf.mxu0
    %v912 = vadd.f32 %v708, %v911
    %v913 = vpop.f32.mrf.mxu0
    %914 = vmatprep.mubr.bf16.mxu0 0
    %915 = vmatmul.mubr.bf16.gmra.mxu0 %v765
    %v916 = vpop.f32.mrf.mxu0
    %v917 = vadd.f32 %v708, %v916
    %v918 = vpop.f32.mrf.mxu0
    %v919 = vpop.f32.mrf.mxu0
    %v920 = vadd.f32 %v708, %v919
    %v921 = vpop.f32.mrf.mxu0
    %922 = vmatprep.mubr.bf16.mxu0 0
    %923 = vmatmul.mubr.bf16.gmra.mxu0 %v768
    %v924 = vpop.f32.mrf.mxu0
    %v925 = vadd.f32 %v708, %v924
    %v926 = vpop.f32.mrf.mxu0
    %v927 = vpop.f32.mrf.mxu0
    %v928 = vadd.f32 %v708, %v927
    %v929 = vpop.f32.mrf.mxu0
    %930 = vdwg.mxu0
    %931 = vst [vmem:[#allocation2] sm:$0xff] %v805
    %932 = vst [vmem:[#allocation2 + $0x8] sm:$0xff] %v808
    %933 = vst [vmem:[#allocation2 + $0x10] sm:$0xff] %v813
    %934 = vst [vmem:[#allocation2 + $0x18] sm:$0xff] %v816
    %935 = vst [vmem:[#allocation2 + $0x20] sm:$0xff] %v821
    %936 = vst [vmem:[#allocation2 + $0x28] sm:$0xff] %v824
    %937 = vst [vmem:[#allocation2 + $0x30] sm:$0xff] %v829
    %938 = vst [vmem:[#allocation2 + $0x38] sm:$0xff] %v832
    %939 = vst [vmem:[#allocation2 + $0x40] sm:$0xff] %v837
    %940 = vst [vmem:[#allocation2 + $0x48] sm:$0xff] %v840
    %941 = vst [vmem:[#allocation2 + $0x50] sm:$0xff] %v845
    %942 = vst [vmem:[#allocation2 + $0x58] sm:$0xff] %v848
    %943 = vst [vmem:[#allocation2 + $0x60] sm:$0xff] %v853
    %944 = vst [vmem:[#allocation2 + $0x68] sm:$0xff] %v856
    %945 = vst [vmem:[#allocation2 + $0x70] sm:$0xff] %v861
    %946 = vst [vmem:[#allocation2 + $0x78] sm:$0xff] %v864
    %947 = vst [vmem:[#allocation2 + $0x80] sm:$0xff] %v869
    %948 = vst [vmem:[#allocation2 + $0x88] sm:$0xff] %v872
    %949 = vst [vmem:[#allocation2 + $0x90] sm:$0xff] %v877
    %950 = vst [vmem:[#allocation2 + $0x98] sm:$0xff] %v880
    %951 = vst [vmem:[#allocation2 + $0xa0] sm:$0xff] %v885
    %952 = vst [vmem:[#allocation2 + $0xa8] sm:$0xff] %v888
    %953 = vst [vmem:[#allocation2 + $0xb0] sm:$0xff] %v893
    %954 = vst [vmem:[#allocation2 + $0xb8] sm:$0xff] %v896
    %955 = vst [vmem:[#allocation2 + $0xc0] sm:$0xff] %v901
    %956 = vst [vmem:[#allocation2 + $0xc8] sm:$0xff] %v904
    %957 = vst [vmem:[#allocation2 + $0xd0] sm:$0xff] %v909
    %958 = vst [vmem:[#allocation2 + $0xd8] sm:$0xff] %v912
    %959 = vst [vmem:[#allocation2 + $0xe0] sm:$0xff] %v917
    %960 = vst [vmem:[#allocation2 + $0xe8] sm:$0xff] %v920
    %961 = vst [vmem:[#allocation2 + $0xf0] sm:$0xff] %v925
    %962 = vst [vmem:[#allocation2 + $0xf8] sm:$0xff] %v928
    %v963 = vld [vmem:[%s1] sm:$0xff]
    %v964 = vld [vmem:[%s1 + $0x8] sm:$0xff]
    %v965 = vld [vmem:[%s1 + $0x10] sm:$0xff]
    %v966 = vld [vmem:[%s1 + $0x18] sm:$0xff]
    %v971 = vcombine.high %v963, %v963
    %v973 = vunpack.c.l.s4 1966171168
    %v974 = vunpack.c.0.s8 %v973
    %v975 = vlaneseq
    %v976 = vshrl.u32 %v975, 7
    %v977 = vsub.s32 %v974, %v976
    %v978 = vrot.slane %v963, %v977
    %v980 = vunpack.c.l.s4 1966171168
    %v981 = vunpack.c.0.s8 %v980
    %v982 = vlaneseq
    %v983 = vshrl.u32 %v982, 7
    %v984 = vsub.s32 %v981, %v983
    %v985 = vrot.slane %v971, %v984
    %v986 = vcombine.high %v978, %v978
    %v987 = vcombine.high %v985, %v985
    %v989 = vunpack.c.l.s4 1966171168
    %v990 = vunpack.c.0.s8 %v989
    %v991 = vlaneseq
    %v992 = vshrl.u32 %v991, 7
    %v993 = vsub.s32 %v990, %v992
    %v994 = vrot.slane %v978, %v993
    %v996 = vunpack.c.l.s4 1966171168
    %v997 = vunpack.c.0.s8 %v996
    %v998 = vlaneseq
    %v999 = vshrl.u32 %v998, 7
    %v1000 = vsub.s32 %v997, %v999
    %v1001 = vrot.slane %v985, %v1000
    %v1003 = vunpack.c.l.s4 1966171168
    %v1004 = vunpack.c.0.s8 %v1003
    %v1005 = vlaneseq
    %v1006 = vshrl.u32 %v1005, 7
    %v1007 = vsub.s32 %v1004, %v1006
    %v1008 = vrot.slane %v986, %v1007
    %v1010 = vunpack.c.l.s4 1966171168
    %v1011 = vunpack.c.0.s8 %v1010
    %v1012 = vlaneseq
    %v1013 = vshrl.u32 %v1012, 7
    %v1014 = vsub.s32 %v1011, %v1013
    %v1015 = vrot.slane %v987, %v1014
    %v1016 = vcombine.high %v994, %v994
    %v1017 = vcombine.high %v1001, %v1001
    %v1018 = vcombine.high %v1008, %v1008
    %v1019 = vcombine.high %v1015, %v1015
    %v1020 = vcombine.high %v964, %v964
    %v1022 = vunpack.c.l.s4 1966171168
    %v1023 = vunpack.c.0.s8 %v1022
    %v1024 = vlaneseq
    %v1025 = vshrl.u32 %v1024, 7
    %v1026 = vsub.s32 %v1023, %v1025
    %v1027 = vrot.slane %v964, %v1026
    %v1029 = vunpack.c.l.s4 1966171168
    %v1030 = vunpack.c.0.s8 %v1029
    %v1031 = vlaneseq
    %v1032 = vshrl.u32 %v1031, 7
    %v1033 = vsub.s32 %v1030, %v1032
    %v1034 = vrot.slane %v1020, %v1033
    %v1035 = vcombine.high %v1027, %v1027
    %v1036 = vcombine.high %v1034, %v1034
    %v1038 = vunpack.c.l.s4 1966171168
    %v1039 = vunpack.c.0.s8 %v1038
    %v1040 = vlaneseq
    %v1041 = vshrl.u32 %v1040, 7
    %v1042 = vsub.s32 %v1039, %v1041
    %v1043 = vrot.slane %v1027, %v1042
    %v1045 = vunpack.c.l.s4 1966171168
    %v1046 = vunpack.c.0.s8 %v1045
    %v1047 = vlaneseq
    %v1048 = vshrl.u32 %v1047, 7
    %v1049 = vsub.s32 %v1046, %v1048
    %v1050 = vrot.slane %v1034, %v1049
    %v1052 = vunpack.c.l.s4 1966171168
    %v1053 = vunpack.c.0.s8 %v1052
    %v1054 = vlaneseq
    %v1055 = vshrl.u32 %v1054, 7
    %v1056 = vsub.s32 %v1053, %v1055
    %v1057 = vrot.slane %v1035, %v1056
    %v1059 = vunpack.c.l.s4 1966171168
    %v1060 = vunpack.c.0.s8 %v1059
    %v1061 = vlaneseq
    %v1062 = vshrl.u32 %v1061, 7
    %v1063 = vsub.s32 %v1060, %v1062
    %v1064 = vrot.slane %v1036, %v1063
    %v1065 = vcombine.high %v1043, %v1043
    %v1066 = vcombine.high %v1050, %v1050
    %v1067 = vcombine.high %v1057, %v1057
    %v1068 = vcombine.high %v1064, %v1064
    %v1069 = vcombine.high %v965, %v965
    %v1071 = vunpack.c.l.s4 1966171168
    %v1072 = vunpack.c.0.s8 %v1071
    %v1073 = vlaneseq
    %v1074 = vshrl.u32 %v1073, 7
    %v1075 = vsub.s32 %v1072, %v1074
    %v1076 = vrot.slane %v965, %v1075
    %v1078 = vunpack.c.l.s4 1966171168
    %v1079 = vunpack.c.0.s8 %v1078
    %v1080 = vlaneseq
    %v1081 = vshrl.u32 %v1080, 7
    %v1082 = vsub.s32 %v1079, %v1081
    %v1083 = vrot.slane %v1069, %v1082
    %v1084 = vcombine.high %v1076, %v1076
    %v1085 = vcombine.high %v1083, %v1083
    %v1087 = vunpack.c.l.s4 1966171168
    %v1088 = vunpack.c.0.s8 %v1087
    %v1089 = vlaneseq
    %v1090 = vshrl.u32 %v1089, 7
    %v1091 = vsub.s32 %v1088, %v1090
    %v1092 = vrot.slane %v1076, %v1091
    %v1094 = vunpack.c.l.s4 1966171168
    %v1095 = vunpack.c.0.s8 %v1094
    %v1096 = vlaneseq
    %v1097 = vshrl.u32 %v1096, 7
    %v1098 = vsub.s32 %v1095, %v1097
    %v1099 = vrot.slane %v1083, %v1098
    %v1101 = vunpack.c.l.s4 1966171168
    %v1102 = vunpack.c.0.s8 %v1101
    %v1103 = vlaneseq
    %v1104 = vshrl.u32 %v1103, 7
    %v1105 = vsub.s32 %v1102, %v1104
    %v1106 = vrot.slane %v1084, %v1105
    %v1108 = vunpack.c.l.s4 1966171168
    %v1109 = vunpack.c.0.s8 %v1108
    %v1110 = vlaneseq
    %v1111 = vshrl.u32 %v1110, 7
    %v1112 = vsub.s32 %v1109, %v1111
    %v1113 = vrot.slane %v1085, %v1112
    %v1114 = vcombine.high %v1092, %v1092
    %v1115 = vcombine.high %v1099, %v1099
    %v1116 = vcombine.high %v1106, %v1106
    %v1117 = vcombine.high %v1113, %v1113
    %v1118 = vcombine.high %v966, %v966
    %v1120 = vunpack.c.l.s4 1966171168
    %v1121 = vunpack.c.0.s8 %v1120
    %v1122 = vlaneseq
    %v1123 = vshrl.u32 %v1122, 7
    %v1124 = vsub.s32 %v1121, %v1123
    %v1125 = vrot.slane %v966, %v1124
    %v1127 = vunpack.c.l.s4 1966171168
    %v1128 = vunpack.c.0.s8 %v1127
    %v1129 = vlaneseq
    %v1130 = vshrl.u32 %v1129, 7
    %v1131 = vsub.s32 %v1128, %v1130
    %v1132 = vrot.slane %v1118, %v1131
    %v1133 = vcombine.high %v1125, %v1125
    %v1134 = vcombine.high %v1132, %v1132
    %v1136 = vunpack.c.l.s4 1966171168
    %v1137 = vunpack.c.0.s8 %v1136
    %v1138 = vlaneseq
    %v1139 = vshrl.u32 %v1138, 7
    %v1140 = vsub.s32 %v1137, %v1139
    %v1141 = vrot.slane %v1125, %v1140
    %v1143 = vunpack.c.l.s4 1966171168
    %v1144 = vunpack.c.0.s8 %v1143
    %v1145 = vlaneseq
    %v1146 = vshrl.u32 %v1145, 7
    %v1147 = vsub.s32 %v1144, %v1146
    %v1148 = vrot.slane %v1132, %v1147
    %v1150 = vunpack.c.l.s4 1966171168
    %v1151 = vunpack.c.0.s8 %v1150
    %v1152 = vlaneseq
    %v1153 = vshrl.u32 %v1152, 7
    %v1154 = vsub.s32 %v1151, %v1153
    %v1155 = vrot.slane %v1133, %v1154
    %v1157 = vunpack.c.l.s4 1966171168
    %v1158 = vunpack.c.0.s8 %v1157
    %v1159 = vlaneseq
    %v1160 = vshrl.u32 %v1159, 7
    %v1161 = vsub.s32 %v1158, %v1160
    %v1162 = vrot.slane %v1134, %v1161
    %v1163 = vcombine.high %v1141, %v1141
    %v1164 = vcombine.high %v1148, %v1148
    %v1165 = vcombine.high %v1155, %v1155
    %v1166 = vcombine.high %v1162, %v1162
    %vm1167 = vcmp.gt.f32.partialorder %v805, 0.0
    %vm1168 = vcmp.gt.f32.partialorder %v808, 0.0
    %vm1169 = vcmp.gt.f32.partialorder %v813, 0.0
    %vm1170 = vcmp.gt.f32.partialorder %v816, 0.0
    %vm1171 = vcmp.gt.f32.partialorder %v821, 0.0
    %vm1172 = vcmp.gt.f32.partialorder %v824, 0.0
    %vm1173 = vcmp.gt.f32.partialorder %v829, 0.0
    %vm1174 = vcmp.gt.f32.partialorder %v832, 0.0
    %vm1175 = vcmp.gt.f32.partialorder %v837, 0.0
    %vm1176 = vcmp.gt.f32.partialorder %v840, 0.0
    %vm1177 = vcmp.gt.f32.partialorder %v845, 0.0
    %vm1178 = vcmp.gt.f32.partialorder %v848, 0.0
    %vm1179 = vcmp.gt.f32.partialorder %v853, 0.0
    %vm1180 = vcmp.gt.f32.partialorder %v856, 0.0
    %vm1181 = vcmp.gt.f32.partialorder %v861, 0.0
    %vm1182 = vcmp.gt.f32.partialorder %v864, 0.0
    %vm1183 = vcmp.gt.f32.partialorder %v869, 0.0
    %vm1184 = vcmp.gt.f32.partialorder %v872, 0.0
    %vm1185 = vcmp.gt.f32.partialorder %v877, 0.0
    %vm1186 = vcmp.gt.f32.partialorder %v880, 0.0
    %vm1187 = vcmp.gt.f32.partialorder %v885, 0.0
    %vm1188 = vcmp.gt.f32.partialorder %v888, 0.0
    %vm1189 = vcmp.gt.f32.partialorder %v893, 0.0
    %vm1190 = vcmp.gt.f32.partialorder %v896, 0.0
    %vm1191 = vcmp.gt.f32.partialorder %v901, 0.0
    %vm1192 = vcmp.gt.f32.partialorder %v904, 0.0
    %vm1193 = vcmp.gt.f32.partialorder %v909, 0.0
    %vm1194 = vcmp.gt.f32.partialorder %v912, 0.0
    %vm1195 = vcmp.gt.f32.partialorder %v917, 0.0
    %vm1196 = vcmp.gt.f32.partialorder %v920, 0.0
    %vm1197 = vcmp.gt.f32.partialorder %v925, 0.0
    %vm1198 = vcmp.gt.f32.partialorder %v928, 0.0
    %v1199 = vsel %vm1167, 1.0, 0.0
    %v1200 = vsel %vm1168, 1.0, 0.0
    %v1201 = vsel %vm1169, 1.0, 0.0
    %v1202 = vsel %vm1170, 1.0, 0.0
    %v1203 = vsel %vm1171, 1.0, 0.0
    %v1204 = vsel %vm1172, 1.0, 0.0
    %v1205 = vsel %vm1173, 1.0, 0.0
    %v1206 = vsel %vm1174, 1.0, 0.0
    %v1207 = vsel %vm1175, 1.0, 0.0
    %v1208 = vsel %vm1176, 1.0, 0.0
    %v1209 = vsel %vm1177, 1.0, 0.0
    %v1210 = vsel %vm1178, 1.0, 0.0
    %v1211 = vsel %vm1179, 1.0, 0.0
    %v1212 = vsel %vm1180, 1.0, 0.0
    %v1213 = vsel %vm1181, 1.0, 0.0
    %v1214 = vsel %vm1182, 1.0, 0.0
    %v1215 = vsel %vm1183, 1.0, 0.0
    %v1216 = vsel %vm1184, 1.0, 0.0
    %v1217 = vsel %vm1185, 1.0, 0.0
    %v1218 = vsel %vm1186, 1.0, 0.0
    %v1219 = vsel %vm1187, 1.0, 0.0
    %v1220 = vsel %vm1188, 1.0, 0.0
    %v1221 = vsel %vm1189, 1.0, 0.0
    %v1222 = vsel %vm1190, 1.0, 0.0
    %v1223 = vsel %vm1191, 1.0, 0.0
    %v1224 = vsel %vm1192, 1.0, 0.0
    %v1225 = vsel %vm1193, 1.0, 0.0
    %v1226 = vsel %vm1194, 1.0, 0.0
    %v1227 = vsel %vm1195, 1.0, 0.0
    %v1228 = vsel %vm1196, 1.0, 0.0
    %v1229 = vsel %vm1197, 1.0, 0.0
    %v1230 = vsel %vm1198, 1.0, 0.0
    %v1231 = vlaneseq
    %v1232 = vshrl.u32 %v1231, 7
    %v1233 = vsub.s32 0, %v1232
    %v1234 = vrot.slane %v994, %v1233
    %v1235 = vlaneseq
    %v1236 = vshrl.u32 %v1235, 7
    %v1237 = vsub.s32 0, %v1236
    %v1238 = vrot.slane %v1008, %v1237
    %v1239 = vlaneseq
    %v1240 = vshrl.u32 %v1239, 7
    %v1241 = vsub.s32 0, %v1240
    %v1242 = vrot.slane %v1016, %v1241
    %v1243 = vlaneseq
    %v1244 = vshrl.u32 %v1243, 7
    %v1245 = vsub.s32 0, %v1244
    %v1246 = vrot.slane %v1018, %v1245
    %v1247 = vlaneseq
    %v1248 = vshrl.u32 %v1247, 7
    %v1249 = vsub.s32 0, %v1248
    %v1250 = vrot.slane %v1001, %v1249
    %v1251 = vlaneseq
    %v1252 = vshrl.u32 %v1251, 7
    %v1253 = vsub.s32 0, %v1252
    %v1254 = vrot.slane %v1015, %v1253
    %v1255 = vlaneseq
    %v1256 = vshrl.u32 %v1255, 7
    %v1257 = vsub.s32 0, %v1256
    %v1258 = vrot.slane %v1017, %v1257
    %v1259 = vlaneseq
    %v1260 = vshrl.u32 %v1259, 7
    %v1261 = vsub.s32 0, %v1260
    %v1262 = vrot.slane %v1019, %v1261
    %v1263 = vlaneseq
    %v1264 = vshrl.u32 %v1263, 7
    %v1265 = vsub.s32 0, %v1264
    %v1266 = vrot.slane %v1043, %v1265
    %v1267 = vlaneseq
    %v1268 = vshrl.u32 %v1267, 7
    %v1269 = vsub.s32 0, %v1268
    %v1270 = vrot.slane %v1057, %v1269
    %v1271 = vlaneseq
    %v1272 = vshrl.u32 %v1271, 7
    %v1273 = vsub.s32 0, %v1272
    %v1274 = vrot.slane %v1065, %v1273
    %v1275 = vlaneseq
    %v1276 = vshrl.u32 %v1275, 7
    %v1277 = vsub.s32 0, %v1276
    %v1278 = vrot.slane %v1067, %v1277
    %v1279 = vlaneseq
    %v1280 = vshrl.u32 %v1279, 7
    %v1281 = vsub.s32 0, %v1280
    %v1282 = vrot.slane %v1050, %v1281
    %v1283 = vlaneseq
    %v1284 = vshrl.u32 %v1283, 7
    %v1285 = vsub.s32 0, %v1284
    %v1286 = vrot.slane %v1064, %v1285
    %v1287 = vlaneseq
    %v1288 = vshrl.u32 %v1287, 7
    %v1289 = vsub.s32 0, %v1288
    %v1290 = vrot.slane %v1066, %v1289
    %v1291 = vlaneseq
    %v1292 = vshrl.u32 %v1291, 7
    %v1293 = vsub.s32 0, %v1292
    %v1294 = vrot.slane %v1068, %v1293
    %v1295 = vlaneseq
    %v1296 = vshrl.u32 %v1295, 7
    %v1297 = vsub.s32 0, %v1296
    %v1298 = vrot.slane %v1092, %v1297
    %v1299 = vlaneseq
    %v1300 = vshrl.u32 %v1299, 7
    %v1301 = vsub.s32 0, %v1300
    %v1302 = vrot.slane %v1106, %v1301
    %v1303 = vlaneseq
    %v1304 = vshrl.u32 %v1303, 7
    %v1305 = vsub.s32 0, %v1304
    %v1306 = vrot.slane %v1114, %v1305
    %v1307 = vlaneseq
    %v1308 = vshrl.u32 %v1307, 7
    %v1309 = vsub.s32 0, %v1308
    %v1310 = vrot.slane %v1116, %v1309
    %v1311 = vlaneseq
    %v1312 = vshrl.u32 %v1311, 7
    %v1313 = vsub.s32 0, %v1312
    %v1314 = vrot.slane %v1099, %v1313
    %v1315 = vlaneseq
    %v1316 = vshrl.u32 %v1315, 7
    %v1317 = vsub.s32 0, %v1316
    %v1318 = vrot.slane %v1113, %v1317
    %v1319 = vlaneseq
    %v1320 = vshrl.u32 %v1319, 7
    %v1321 = vsub.s32 0, %v1320
    %v1322 = vrot.slane %v1115, %v1321
    %v1323 = vlaneseq
    %v1324 = vshrl.u32 %v1323, 7
    %v1325 = vsub.s32 0, %v1324
    %v1326 = vrot.slane %v1117, %v1325
    %v1327 = vlaneseq
    %v1328 = vshrl.u32 %v1327, 7
    %v1329 = vsub.s32 0, %v1328
    %v1330 = vrot.slane %v1141, %v1329
    %v1331 = vlaneseq
    %v1332 = vshrl.u32 %v1331, 7
    %v1333 = vsub.s32 0, %v1332
    %v1334 = vrot.slane %v1155, %v1333
    %v1335 = vlaneseq
    %v1336 = vshrl.u32 %v1335, 7
    %v1337 = vsub.s32 0, %v1336
    %v1338 = vrot.slane %v1163, %v1337
    %v1339 = vlaneseq
    %v1340 = vshrl.u32 %v1339, 7
    %v1341 = vsub.s32 0, %v1340
    %v1342 = vrot.slane %v1165, %v1341
    %v1343 = vlaneseq
    %v1344 = vshrl.u32 %v1343, 7
    %v1345 = vsub.s32 0, %v1344
    %v1346 = vrot.slane %v1148, %v1345
    %v1347 = vlaneseq
    %v1348 = vshrl.u32 %v1347, 7
    %v1349 = vsub.s32 0, %v1348
    %v1350 = vrot.slane %v1162, %v1349
    %v1351 = vlaneseq
    %v1352 = vshrl.u32 %v1351, 7
    %v1353 = vsub.s32 0, %v1352
    %v1354 = vrot.slane %v1164, %v1353
    %v1355 = vlaneseq
    %v1356 = vshrl.u32 %v1355, 7
    %v1357 = vsub.s32 0, %v1356
    %v1358 = vrot.slane %v1166, %v1357
    %v1391 = vsub.f32 %v1234, %v1199
    %v1392 = vsub.f32 %v1238, %v1200
    %v1393 = vsub.f32 %v1242, %v1201
    %v1394 = vsub.f32 %v1246, %v1202
    %v1395 = vsub.f32 %v1250, %v1203
    %v1396 = vsub.f32 %v1254, %v1204
    %v1397 = vsub.f32 %v1258, %v1205
    %v1398 = vsub.f32 %v1262, %v1206
    %v1399 = vsub.f32 %v1266, %v1207
    %v1400 = vsub.f32 %v1270, %v1208
    %v1401 = vsub.f32 %v1274, %v1209
    %v1402 = vsub.f32 %v1278, %v1210
    %v1403 = vsub.f32 %v1282, %v1211
    %v1404 = vsub.f32 %v1286, %v1212
    %v1405 = vsub.f32 %v1290, %v1213
    %v1406 = vsub.f32 %v1294, %v1214
    %v1407 = vsub.f32 %v1298, %v1215
    %v1408 = vsub.f32 %v1302, %v1216
    %v1409 = vsub.f32 %v1306, %v1217
    %v1410 = vsub.f32 %v1310, %v1218
    %v1411 = vsub.f32 %v1314, %v1219
    %v1412 = vsub.f32 %v1318, %v1220
    %v1413 = vsub.f32 %v1322, %v1221
    %v1414 = vsub.f32 %v1326, %v1222
    %v1415 = vsub.f32 %v1330, %v1223
    %v1416 = vsub.f32 %v1334, %v1224
    %v1417 = vsub.f32 %v1338, %v1225
    %v1418 = vsub.f32 %v1342, %v1226
    %v1419 = vsub.f32 %v1346, %v1227
    %v1420 = vsub.f32 %v1350, %v1228
    %v1421 = vsub.f32 %v1354, %v1229
    %v1422 = vsub.f32 %v1358, %v1230
    %v1423 = vmul.f32 %v1391, %v805
    %v1424 = vmul.f32 %v1392, %v808
    %v1425 = vmul.f32 %v1393, %v813
    %v1426 = vmul.f32 %v1394, %v816
    %v1427 = vmul.f32 %v1395, %v821
    %v1428 = vmul.f32 %v1396, %v824
    %v1429 = vmul.f32 %v1397, %v829
    %v1430 = vmul.f32 %v1398, %v832
    %v1431 = vmul.f32 %v1399, %v837
    %v1432 = vmul.f32 %v1400, %v840
    %v1433 = vmul.f32 %v1401, %v845
    %v1434 = vmul.f32 %v1402, %v848
    %v1435 = vmul.f32 %v1403, %v853
    %v1436 = vmul.f32 %v1404, %v856
    %v1437 = vmul.f32 %v1405, %v861
    %v1438 = vmul.f32 %v1406, %v864
    %v1439 = vmul.f32 %v1407, %v869
    %v1440 = vmul.f32 %v1408, %v872
    %v1441 = vmul.f32 %v1409, %v877
    %v1442 = vmul.f32 %v1410, %v880
    %v1443 = vmul.f32 %v1411, %v885
    %v1444 = vmul.f32 %v1412, %v888
    %v1445 = vmul.f32 %v1413, %v893
    %v1446 = vmul.f32 %v1414, %v896
    %v1447 = vmul.f32 %v1415, %v901
    %v1448 = vmul.f32 %v1416, %v904
    %v1449 = vmul.f32 %v1417, %v909
    %v1450 = vmul.f32 %v1418, %v912
    %v1451 = vmul.f32 %v1419, %v917
    %v1452 = vmul.f32 %v1420, %v920
    %v1453 = vmul.f32 %v1421, %v925
    %v1454 = vmul.f32 %v1422, %v928
    %v1455 = vand.u32 2147483647, %v805
    %v1456 = vand.u32 2147483647, %v808
    %v1457 = vand.u32 2147483647, %v813
    %v1458 = vand.u32 2147483647, %v816
    %v1459 = vand.u32 2147483647, %v821
    %v1460 = vand.u32 2147483647, %v824
    %v1461 = vand.u32 2147483647, %v829
    %v1462 = vand.u32 2147483647, %v832
    %v1463 = vand.u32 2147483647, %v837
    %v1464 = vand.u32 2147483647, %v840
    %v1465 = vand.u32 2147483647, %v845
    %v1466 = vand.u32 2147483647, %v848
    %v1467 = vand.u32 2147483647, %v853
    %v1468 = vand.u32 2147483647, %v856
    %v1469 = vand.u32 2147483647, %v861
    %v1470 = vand.u32 2147483647, %v864
    %v1471 = vand.u32 2147483647, %v869
    %v1472 = vand.u32 2147483647, %v872
    %v1473 = vand.u32 2147483647, %v877
    %v1474 = vand.u32 2147483647, %v880
    %v1475 = vand.u32 2147483647, %v885
    %v1476 = vand.u32 2147483647, %v888
    %v1477 = vand.u32 2147483647, %v893
    %v1478 = vand.u32 2147483647, %v896
    %v1479 = vand.u32 2147483647, %v901
    %v1480 = vand.u32 2147483647, %v904
    %v1481 = vand.u32 2147483647, %v909
    %v1482 = vand.u32 2147483647, %v912
    %v1483 = vand.u32 2147483647, %v917
    %v1484 = vand.u32 2147483647, %v920
    %v1485 = vand.u32 2147483647, %v925
    %v1486 = vand.u32 2147483647, %v928
    %v1487 = vsub.f32 0.0, %v1455
    %v1488 = vsub.f32 0.0, %v1456
    %v1489 = vsub.f32 0.0, %v1457
    %v1490 = vsub.f32 0.0, %v1458
    %v1491 = vsub.f32 0.0, %v1459
    %v1492 = vsub.f32 0.0, %v1460
    %v1493 = vsub.f32 0.0, %v1461
    %v1494 = vsub.f32 0.0, %v1462
    %v1495 = vsub.f32 0.0, %v1463
    %v1496 = vsub.f32 0.0, %v1464
    %v1497 = vsub.f32 0.0, %v1465
    %v1498 = vsub.f32 0.0, %v1466
    %v1499 = vsub.f32 0.0, %v1467
    %v1500 = vsub.f32 0.0, %v1468
    %v1501 = vsub.f32 0.0, %v1469
    %v1502 = vsub.f32 0.0, %v1470
    %v1503 = vsub.f32 0.0, %v1471
    %v1504 = vsub.f32 0.0, %v1472
    %v1505 = vsub.f32 0.0, %v1473
    %v1506 = vsub.f32 0.0, %v1474
    %v1507 = vsub.f32 0.0, %v1475
    %v1508 = vsub.f32 0.0, %v1476
    %v1509 = vsub.f32 0.0, %v1477
    %v1510 = vsub.f32 0.0, %v1478
    %v1511 = vsub.f32 0.0, %v1479
    %v1512 = vsub.f32 0.0, %v1480
    %v1513 = vsub.f32 0.0, %v1481
    %v1514 = vsub.f32 0.0, %v1482
    %v1515 = vsub.f32 0.0, %v1483
    %v1516 = vsub.f32 0.0, %v1484
    %v1517 = vsub.f32 0.0, %v1485
    %v1518 = vsub.f32 0.0, %v1486
    %v1519 = vmul.f32 %v1487, 1.442695
    %v1520 = vpow.pop %v1519
    %v1521 = vmul.f32 %v1488, 1.442695
    %v1522 = vpow.pop %v1521
    %v1523 = vmul.f32 %v1489, 1.442695
    %v1524 = vpow.pop %v1523
    %v1525 = vmul.f32 %v1490, 1.442695
    %v1526 = vpow.pop %v1525
    %v1527 = vmul.f32 %v1491, 1.442695
    %v1528 = vpow.pop %v1527
    %v1529 = vmul.f32 %v1492, 1.442695
    %v1530 = vpow.pop %v1529
    %v1531 = vmul.f32 %v1493, 1.442695
    %v1532 = vpow.pop %v1531
    %v1533 = vmul.f32 %v1494, 1.442695
    %v1534 = vpow.pop %v1533
    %v1535 = vmul.f32 %v1495, 1.442695
    %v1536 = vpow.pop %v1535
    %v1537 = vmul.f32 %v1496, 1.442695
    %v1538 = vpow.pop %v1537
    %v1539 = vmul.f32 %v1497, 1.442695
    %v1540 = vpow.pop %v1539
    %v1541 = vmul.f32 %v1498, 1.442695
    %v1542 = vpow.pop %v1541
    %v1543 = vmul.f32 %v1499, 1.442695
    %v1544 = vpow.pop %v1543
    %v1545 = vmul.f32 %v1500, 1.442695
    %v1546 = vpow.pop %v1545
    %v1547 = vmul.f32 %v1501, 1.442695
    %v1548 = vpow.pop %v1547
    %v1549 = vmul.f32 %v1502, 1.442695
    %v1550 = vpow.pop %v1549
    %v1551 = vmul.f32 %v1503, 1.442695
    %v1552 = vpow.pop %v1551
    %v1553 = vmul.f32 %v1504, 1.442695
    %v1554 = vpow.pop %v1553
    %v1555 = vmul.f32 %v1505, 1.442695
    %v1556 = vpow.pop %v1555
    %v1557 = vmul.f32 %v1506, 1.442695
    %v1558 = vpow.pop %v1557
    %v1559 = vmul.f32 %v1507, 1.442695
    %v1560 = vpow.pop %v1559
    %v1561 = vmul.f32 %v1508, 1.442695
    %v1562 = vpow.pop %v1561
    %v1563 = vmul.f32 %v1509, 1.442695
    %v1564 = vpow.pop %v1563
    %v1565 = vmul.f32 %v1510, 1.442695
    %v1566 = vpow.pop %v1565
    %v1567 = vmul.f32 %v1511, 1.442695
    %v1568 = vpow.pop %v1567
    %v1569 = vmul.f32 %v1512, 1.442695
    %v1570 = vpow.pop %v1569
    %v1571 = vmul.f32 %v1513, 1.442695
    %v1572 = vpow.pop %v1571
    %v1573 = vmul.f32 %v1514, 1.442695
    %v1574 = vpow.pop %v1573
    %v1575 = vmul.f32 %v1515, 1.442695
    %v1576 = vpow.pop %v1575
    %v1577 = vmul.f32 %v1516, 1.442695
    %v1578 = vpow.pop %v1577
    %v1579 = vmul.f32 %v1517, 1.442695
    %v1580 = vpow.pop %v1579
    %v1581 = vmul.f32 %v1518, 1.442695
    %v1582 = vpow.pop %v1581
    %v1583 = vadd.f32 %v1520, 1.0
    %v1584 = vlog2.pop %v1583
    %v1585 = vmul.f32 %v1584, 0.6931472
    %v1586 = vmul.f32 -0.5, %v1520
    %v1587 = vadd.f32 %v1586, 1.0
    %v1588 = vmul.f32 %v1587, %v1520
    %v1589 = vand.u32 2147483647, %v1520
    %vm1590 = vcmp.lt.f32.partialorder %v1589, 0.0004427343
    %v1591 = vsel %vm1590, %v1588, %v1585
    %v1592 = vadd.f32 %v1522, 1.0
    %v1593 = vlog2.pop %v1592
    %v1594 = vmul.f32 %v1593, 0.6931472
    %v1595 = vmul.f32 -0.5, %v1522
    %v1596 = vadd.f32 %v1595, 1.0
    %v1597 = vmul.f32 %v1596, %v1522
    %v1598 = vand.u32 2147483647, %v1522
    %vm1599 = vcmp.lt.f32.partialorder %v1598, 0.0004427343
    %v1600 = vsel %vm1599, %v1597, %v1594
    %v1601 = vadd.f32 %v1524, 1.0
    %v1602 = vlog2.pop %v1601
    %v1603 = vmul.f32 %v1602, 0.6931472
    %v1604 = vmul.f32 -0.5, %v1524
    %v1605 = vadd.f32 %v1604, 1.0
    %v1606 = vmul.f32 %v1605, %v1524
    %v1607 = vand.u32 2147483647, %v1524
    %vm1608 = vcmp.lt.f32.partialorder %v1607, 0.0004427343
    %v1609 = vsel %vm1608, %v1606, %v1603
    %v1610 = vadd.f32 %v1526, 1.0
    %v1611 = vlog2.pop %v1610
    %v1612 = vmul.f32 %v1611, 0.6931472
    %v1613 = vmul.f32 -0.5, %v1526
    %v1614 = vadd.f32 %v1613, 1.0
    %v1615 = vmul.f32 %v1614, %v1526
    %v1616 = vand.u32 2147483647, %v1526
    %vm1617 = vcmp.lt.f32.partialorder %v1616, 0.0004427343
    %v1618 = vsel %vm1617, %v1615, %v1612
    %v1619 = vadd.f32 %v1528, 1.0
    %v1620 = vlog2.pop %v1619
    %v1621 = vmul.f32 %v1620, 0.6931472
    %v1622 = vmul.f32 -0.5, %v1528
    %v1623 = vadd.f32 %v1622, 1.0
    %v1624 = vmul.f32 %v1623, %v1528
    %v1625 = vand.u32 2147483647, %v1528
    %vm1626 = vcmp.lt.f32.partialorder %v1625, 0.0004427343
    %v1627 = vsel %vm1626, %v1624, %v1621
    %v1628 = vadd.f32 %v1530, 1.0
    %v1629 = vlog2.pop %v1628
    %v1630 = vmul.f32 %v1629, 0.6931472
    %v1631 = vmul.f32 -0.5, %v1530
    %v1632 = vadd.f32 %v1631, 1.0
    %v1633 = vmul.f32 %v1632, %v1530
    %v1634 = vand.u32 2147483647, %v1530
    %vm1635 = vcmp.lt.f32.partialorder %v1634, 0.0004427343
    %v1636 = vsel %vm1635, %v1633, %v1630
    %v1637 = vadd.f32 %v1532, 1.0
    %v1638 = vlog2.pop %v1637
    %v1639 = vmul.f32 %v1638, 0.6931472
    %v1640 = vmul.f32 -0.5, %v1532
    %v1641 = vadd.f32 %v1640, 1.0
    %v1642 = vmul.f32 %v1641, %v1532
    %v1643 = vand.u32 2147483647, %v1532
    %vm1644 = vcmp.lt.f32.partialorder %v1643, 0.0004427343
    %v1645 = vsel %vm1644, %v1642, %v1639
    %v1646 = vadd.f32 %v1534, 1.0
    %v1647 = vlog2.pop %v1646
    %v1648 = vmul.f32 %v1647, 0.6931472
    %v1649 = vmul.f32 -0.5, %v1534
    %v1650 = vadd.f32 %v1649, 1.0
    %v1651 = vmul.f32 %v1650, %v1534
    %v1652 = vand.u32 2147483647, %v1534
    %vm1653 = vcmp.lt.f32.partialorder %v1652, 0.0004427343
    %v1654 = vsel %vm1653, %v1651, %v1648
    %v1655 = vadd.f32 %v1536, 1.0
    %v1656 = vlog2.pop %v1655
    %v1657 = vmul.f32 %v1656, 0.6931472
    %v1658 = vmul.f32 -0.5, %v1536
    %v1659 = vadd.f32 %v1658, 1.0
    %v1660 = vmul.f32 %v1659, %v1536
    %v1661 = vand.u32 2147483647, %v1536
    %vm1662 = vcmp.lt.f32.partialorder %v1661, 0.0004427343
    %v1663 = vsel %vm1662, %v1660, %v1657
    %v1664 = vadd.f32 %v1538, 1.0
    %v1665 = vlog2.pop %v1664
    %v1666 = vmul.f32 %v1665, 0.6931472
    %v1667 = vmul.f32 -0.5, %v1538
    %v1668 = vadd.f32 %v1667, 1.0
    %v1669 = vmul.f32 %v1668, %v1538
    %v1670 = vand.u32 2147483647, %v1538
    %vm1671 = vcmp.lt.f32.partialorder %v1670, 0.0004427343
    %v1672 = vsel %vm1671, %v1669, %v1666
    %v1673 = vadd.f32 %v1540, 1.0
    %v1674 = vlog2.pop %v1673
    %v1675 = vmul.f32 %v1674, 0.6931472
    %v1676 = vmul.f32 -0.5, %v1540
    %v1677 = vadd.f32 %v1676, 1.0
    %v1678 = vmul.f32 %v1677, %v1540
    %v1679 = vand.u32 2147483647, %v1540
    %vm1680 = vcmp.lt.f32.partialorder %v1679, 0.0004427343
    %v1681 = vsel %vm1680, %v1678, %v1675
    %v1682 = vadd.f32 %v1542, 1.0
    %v1683 = vlog2.pop %v1682
    %v1684 = vmul.f32 %v1683, 0.6931472
    %v1685 = vmul.f32 -0.5, %v1542
    %v1686 = vadd.f32 %v1685, 1.0
    %v1687 = vmul.f32 %v1686, %v1542
    %v1688 = vand.u32 2147483647, %v1542
    %vm1689 = vcmp.lt.f32.partialorder %v1688, 0.0004427343
    %v1690 = vsel %vm1689, %v1687, %v1684
    %v1691 = vadd.f32 %v1544, 1.0
    %v1692 = vlog2.pop %v1691
    %v1693 = vmul.f32 %v1692, 0.6931472
    %v1694 = vmul.f32 -0.5, %v1544
    %v1695 = vadd.f32 %v1694, 1.0
    %v1696 = vmul.f32 %v1695, %v1544
    %v1697 = vand.u32 2147483647, %v1544
    %vm1698 = vcmp.lt.f32.partialorder %v1697, 0.0004427343
    %v1699 = vsel %vm1698, %v1696, %v1693
    %v1700 = vadd.f32 %v1546, 1.0
    %v1701 = vlog2.pop %v1700
    %v1702 = vmul.f32 %v1701, 0.6931472
    %v1703 = vmul.f32 -0.5, %v1546
    %v1704 = vadd.f32 %v1703, 1.0
    %v1705 = vmul.f32 %v1704, %v1546
    %v1706 = vand.u32 2147483647, %v1546
    %vm1707 = vcmp.lt.f32.partialorder %v1706, 0.0004427343
    %v1708 = vsel %vm1707, %v1705, %v1702
    %v1709 = vadd.f32 %v1548, 1.0
    %v1710 = vlog2.pop %v1709
    %v1711 = vmul.f32 %v1710, 0.6931472
    %v1712 = vmul.f32 -0.5, %v1548
    %v1713 = vadd.f32 %v1712, 1.0
    %v1714 = vmul.f32 %v1713, %v1548
    %v1715 = vand.u32 2147483647, %v1548
    %vm1716 = vcmp.lt.f32.partialorder %v1715, 0.0004427343
    %v1717 = vsel %vm1716, %v1714, %v1711
    %v1718 = vadd.f32 %v1550, 1.0
    %v1719 = vlog2.pop %v1718
    %v1720 = vmul.f32 %v1719, 0.6931472
    %v1721 = vmul.f32 -0.5, %v1550
    %v1722 = vadd.f32 %v1721, 1.0
    %v1723 = vmul.f32 %v1722, %v1550
    %v1724 = vand.u32 2147483647, %v1550
    %vm1725 = vcmp.lt.f32.partialorder %v1724, 0.0004427343
    %v1726 = vsel %vm1725, %v1723, %v1720
    %v1727 = vadd.f32 %v1552, 1.0
    %v1728 = vlog2.pop %v1727
    %v1729 = vmul.f32 %v1728, 0.6931472
    %v1730 = vmul.f32 -0.5, %v1552
    %v1731 = vadd.f32 %v1730, 1.0
    %v1732 = vmul.f32 %v1731, %v1552
    %v1733 = vand.u32 2147483647, %v1552
    %vm1734 = vcmp.lt.f32.partialorder %v1733, 0.0004427343
    %v1735 = vsel %vm1734, %v1732, %v1729
    %v1736 = vadd.f32 %v1554, 1.0
    %v1737 = vlog2.pop %v1736
    %v1738 = vmul.f32 %v1737, 0.6931472
    %v1739 = vmul.f32 -0.5, %v1554
    %v1740 = vadd.f32 %v1739, 1.0
    %v1741 = vmul.f32 %v1740, %v1554
    %v1742 = vand.u32 2147483647, %v1554
    %vm1743 = vcmp.lt.f32.partialorder %v1742, 0.0004427343
    %v1744 = vsel %vm1743, %v1741, %v1738
    %v1745 = vadd.f32 %v1556, 1.0
    %v1746 = vlog2.pop %v1745
    %v1747 = vmul.f32 %v1746, 0.6931472
    %v1748 = vmul.f32 -0.5, %v1556
    %v1749 = vadd.f32 %v1748, 1.0
    %v1750 = vmul.f32 %v1749, %v1556
    %v1751 = vand.u32 2147483647, %v1556
    %vm1752 = vcmp.lt.f32.partialorder %v1751, 0.0004427343
    %v1753 = vsel %vm1752, %v1750, %v1747
    %v1754 = vadd.f32 %v1558, 1.0
    %v1755 = vlog2.pop %v1754
    %v1756 = vmul.f32 %v1755, 0.6931472
    %v1757 = vmul.f32 -0.5, %v1558
    %v1758 = vadd.f32 %v1757, 1.0
    %v1759 = vmul.f32 %v1758, %v1558
    %v1760 = vand.u32 2147483647, %v1558
    %vm1761 = vcmp.lt.f32.partialorder %v1760, 0.0004427343
    %v1762 = vsel %vm1761, %v1759, %v1756
    %v1763 = vadd.f32 %v1560, 1.0
    %v1764 = vlog2.pop %v1763
    %v1765 = vmul.f32 %v1764, 0.6931472
    %v1766 = vmul.f32 -0.5, %v1560
    %v1767 = vadd.f32 %v1766, 1.0
    %v1768 = vmul.f32 %v1767, %v1560
    %v1769 = vand.u32 2147483647, %v1560
    %vm1770 = vcmp.lt.f32.partialorder %v1769, 0.0004427343
    %v1771 = vsel %vm1770, %v1768, %v1765
    %v1772 = vadd.f32 %v1562, 1.0
    %v1773 = vlog2.pop %v1772
    %v1774 = vmul.f32 %v1773, 0.6931472
    %v1775 = vmul.f32 -0.5, %v1562
    %v1776 = vadd.f32 %v1775, 1.0
    %v1777 = vmul.f32 %v1776, %v1562
    %v1778 = vand.u32 2147483647, %v1562
    %vm1779 = vcmp.lt.f32.partialorder %v1778, 0.0004427343
    %v1780 = vsel %vm1779, %v1777, %v1774
    %v1781 = vadd.f32 %v1564, 1.0
    %v1782 = vlog2.pop %v1781
    %v1783 = vmul.f32 %v1782, 0.6931472
    %v1784 = vmul.f32 -0.5, %v1564
    %v1785 = vadd.f32 %v1784, 1.0
    %v1786 = vmul.f32 %v1785, %v1564
    %v1787 = vand.u32 2147483647, %v1564
    %vm1788 = vcmp.lt.f32.partialorder %v1787, 0.0004427343
    %v1789 = vsel %vm1788, %v1786, %v1783
    %v1790 = vadd.f32 %v1566, 1.0
    %v1791 = vlog2.pop %v1790
    %v1792 = vmul.f32 %v1791, 0.6931472
    %v1793 = vmul.f32 -0.5, %v1566
    %v1794 = vadd.f32 %v1793, 1.0
    %v1795 = vmul.f32 %v1794, %v1566
    %v1796 = vand.u32 2147483647, %v1566
    %vm1797 = vcmp.lt.f32.partialorder %v1796, 0.0004427343
    %v1798 = vsel %vm1797, %v1795, %v1792
    %v1799 = vadd.f32 %v1568, 1.0
    %v1800 = vlog2.pop %v1799
    %v1801 = vmul.f32 %v1800, 0.6931472
    %v1802 = vmul.f32 -0.5, %v1568
    %v1803 = vadd.f32 %v1802, 1.0
    %v1804 = vmul.f32 %v1803, %v1568
    %v1805 = vand.u32 2147483647, %v1568
    %vm1806 = vcmp.lt.f32.partialorder %v1805, 0.0004427343
    %v1807 = vsel %vm1806, %v1804, %v1801
    %v1808 = vadd.f32 %v1570, 1.0
    %v1809 = vlog2.pop %v1808
    %v1810 = vmul.f32 %v1809, 0.6931472
    %v1811 = vmul.f32 -0.5, %v1570
    %v1812 = vadd.f32 %v1811, 1.0
    %v1813 = vmul.f32 %v1812, %v1570
    %v1814 = vand.u32 2147483647, %v1570
    %vm1815 = vcmp.lt.f32.partialorder %v1814, 0.0004427343
    %v1816 = vsel %vm1815, %v1813, %v1810
    %v1817 = vadd.f32 %v1572, 1.0
    %v1818 = vlog2.pop %v1817
    %v1819 = vmul.f32 %v1818, 0.6931472
    %v1820 = vmul.f32 -0.5, %v1572
    %v1821 = vadd.f32 %v1820, 1.0
    %v1822 = vmul.f32 %v1821, %v1572
    %v1823 = vand.u32 2147483647, %v1572
    %vm1824 = vcmp.lt.f32.partialorder %v1823, 0.0004427343
    %v1825 = vsel %vm1824, %v1822, %v1819
    %v1826 = vadd.f32 %v1574, 1.0
    %v1827 = vlog2.pop %v1826
    %v1828 = vmul.f32 %v1827, 0.6931472
    %v1829 = vmul.f32 -0.5, %v1574
    %v1830 = vadd.f32 %v1829, 1.0
    %v1831 = vmul.f32 %v1830, %v1574
    %v1832 = vand.u32 2147483647, %v1574
    %vm1833 = vcmp.lt.f32.partialorder %v1832, 0.0004427343
    %v1834 = vsel %vm1833, %v1831, %v1828
    %v1835 = vadd.f32 %v1576, 1.0
    %v1836 = vlog2.pop %v1835
    %v1837 = vmul.f32 %v1836, 0.6931472
    %v1838 = vmul.f32 -0.5, %v1576
    %v1839 = vadd.f32 %v1838, 1.0
    %v1840 = vmul.f32 %v1839, %v1576
    %v1841 = vand.u32 2147483647, %v1576
    %vm1842 = vcmp.lt.f32.partialorder %v1841, 0.0004427343
    %v1843 = vsel %vm1842, %v1840, %v1837
    %v1844 = vadd.f32 %v1578, 1.0
    %v1845 = vlog2.pop %v1844
    %v1846 = vmul.f32 %v1845, 0.6931472
    %v1847 = vmul.f32 -0.5, %v1578
    %v1848 = vadd.f32 %v1847, 1.0
    %v1849 = vmul.f32 %v1848, %v1578
    %v1850 = vand.u32 2147483647, %v1578
    %vm1851 = vcmp.lt.f32.partialorder %v1850, 0.0004427343
    %v1852 = vsel %vm1851, %v1849, %v1846
    %v1853 = vadd.f32 %v1580, 1.0
    %v1854 = vlog2.pop %v1853
    %v1855 = vmul.f32 %v1854, 0.6931472
    %v1856 = vmul.f32 -0.5, %v1580
    %v1857 = vadd.f32 %v1856, 1.0
    %v1858 = vmul.f32 %v1857, %v1580
    %v1859 = vand.u32 2147483647, %v1580
    %vm1860 = vcmp.lt.f32.partialorder %v1859, 0.0004427343
    %v1861 = vsel %vm1860, %v1858, %v1855
    %v1862 = vadd.f32 %v1582, 1.0
    %v1863 = vlog2.pop %v1862
    %v1864 = vmul.f32 %v1863, 0.6931472
    %v1865 = vmul.f32 -0.5, %v1582
    %v1866 = vadd.f32 %v1865, 1.0
    %v1867 = vmul.f32 %v1866, %v1582
    %v1868 = vand.u32 2147483647, %v1582
    %vm1869 = vcmp.lt.f32.partialorder %v1868, 0.0004427343
    %v1870 = vsel %vm1869, %v1867, %v1864
    %v1871 = vsub.f32 %v1423, %v1591
    %v1872 = vsub.f32 %v1424, %v1600
    %v1873 = vsub.f32 %v1425, %v1609
    %v1874 = vsub.f32 %v1426, %v1618
    %v1875 = vsub.f32 %v1427, %v1627
    %v1876 = vsub.f32 %v1428, %v1636
    %v1877 = vsub.f32 %v1429, %v1645
    %v1878 = vsub.f32 %v1430, %v1654
    %v1879 = vsub.f32 %v1431, %v1663
    %v1880 = vsub.f32 %v1432, %v1672
    %v1881 = vsub.f32 %v1433, %v1681
    %v1882 = vsub.f32 %v1434, %v1690
    %v1883 = vsub.f32 %v1435, %v1699
    %v1884 = vsub.f32 %v1436, %v1708
    %v1885 = vsub.f32 %v1437, %v1717
    %v1886 = vsub.f32 %v1438, %v1726
    %v1887 = vsub.f32 %v1439, %v1735
    %v1888 = vsub.f32 %v1440, %v1744
    %v1889 = vsub.f32 %v1441, %v1753
    %v1890 = vsub.f32 %v1442, %v1762
    %v1891 = vsub.f32 %v1443, %v1771
    %v1892 = vsub.f32 %v1444, %v1780
    %v1893 = vsub.f32 %v1445, %v1789
    %v1894 = vsub.f32 %v1446, %v1798
    %v1895 = vsub.f32 %v1447, %v1807
    %v1896 = vsub.f32 %v1448, %v1816
    %v1897 = vsub.f32 %v1449, %v1825
    %v1898 = vsub.f32 %v1450, %v1834
    %v1899 = vsub.f32 %v1451, %v1843
    %v1900 = vsub.f32 %v1452, %v1852
    %v1901 = vsub.f32 %v1453, %v1861
    %v1902 = vsub.f32 %v1454, %v1870
    %1903 = vadd.xlane.f32.xlu0 %v1871
    %v1904 = vpop.xlane.xlu0 %1903
    %1905 = vadd.xlane.f32.xlu0 %v1872
    %v1906 = vpop.xlane.xlu0 %1905
    %1907 = vadd.xlane.f32.xlu0 %v1873
    %v1908 = vpop.xlane.xlu0 %1907
    %1909 = vadd.xlane.f32.xlu0 %v1874
    %v1910 = vpop.xlane.xlu0 %1909
    %1911 = vadd.xlane.f32.xlu0 %v1875
    %v1912 = vpop.xlane.xlu0 %1911
    %1913 = vadd.xlane.f32.xlu0 %v1876
    %v1914 = vpop.xlane.xlu0 %1913
    %1915 = vadd.xlane.f32.xlu0 %v1877
    %v1916 = vpop.xlane.xlu0 %1915
    %1917 = vadd.xlane.f32.xlu0 %v1878
    %v1918 = vpop.xlane.xlu0 %1917
    %1919 = vadd.xlane.f32.xlu0 %v1879
    %v1920 = vpop.xlane.xlu0 %1919
    %1921 = vadd.xlane.f32.xlu0 %v1880
    %v1922 = vpop.xlane.xlu0 %1921
    %1923 = vadd.xlane.f32.xlu0 %v1881
    %v1924 = vpop.xlane.xlu0 %1923
    %1925 = vadd.xlane.f32.xlu0 %v1882
    %v1926 = vpop.xlane.xlu0 %1925
    %1927 = vadd.xlane.f32.xlu0 %v1883
    %v1928 = vpop.xlane.xlu0 %1927
    %1929 = vadd.xlane.f32.xlu0 %v1884
    %v1930 = vpop.xlane.xlu0 %1929
    %1931 = vadd.xlane.f32.xlu0 %v1885
    %v1932 = vpop.xlane.xlu0 %1931
    %1933 = vadd.xlane.f32.xlu0 %v1886
    %v1934 = vpop.xlane.xlu0 %1933
    %1935 = vadd.xlane.f32.xlu0 %v1887
    %v1936 = vpop.xlane.xlu0 %1935
    %1937 = vadd.xlane.f32.xlu0 %v1888
    %v1938 = vpop.xlane.xlu0 %1937
    %1939 = vadd.xlane.f32.xlu0 %v1889
    %v1940 = vpop.xlane.xlu0 %1939
    %1941 = vadd.xlane.f32.xlu0 %v1890
    %v1942 = vpop.xlane.xlu0 %1941
    %1943 = vadd.xlane.f32.xlu0 %v1891
    %v1944 = vpop.xlane.xlu0 %1943
    %1945 = vadd.xlane.f32.xlu0 %v1892
    %v1946 = vpop.xlane.xlu0 %1945
    %1947 = vadd.xlane.f32.xlu0 %v1893
    %v1948 = vpop.xlane.xlu0 %1947
    %1949 = vadd.xlane.f32.xlu0 %v1894
    %v1950 = vpop.xlane.xlu0 %1949
    %1951 = vadd.xlane.f32.xlu0 %v1895
    %v1952 = vpop.xlane.xlu0 %1951
    %1953 = vadd.xlane.f32.xlu0 %v1896
    %v1954 = vpop.xlane.xlu0 %1953
    %1955 = vadd.xlane.f32.xlu0 %v1897
    %v1956 = vpop.xlane.xlu0 %1955
    %1957 = vadd.xlane.f32.xlu0 %v1898
    %v1958 = vpop.xlane.xlu0 %1957
    %1959 = vadd.xlane.f32.xlu0 %v1899
    %v1960 = vpop.xlane.xlu0 %1959
    %1961 = vadd.xlane.f32.xlu0 %v1900
    %v1962 = vpop.xlane.xlu0 %1961
    %1963 = vadd.xlane.f32.xlu0 %v1901
    %v1964 = vpop.xlane.xlu0 %1963
    %1965 = vadd.xlane.f32.xlu0 %v1902
    %v1966 = vpop.xlane.xlu0 %1965
    %v1999 = vlaneseq
    %v2000 = vand.u32 %v1999, 127
    %v2001 = vlaneseq
    %v2002 = vshrl.u32 %v2001, 7
    %v2003 = vsub.s32 %v2000, %v2002
    %v2004 = vrot.slane %v1904, %v2003
    %v2005 = vlaneseq
    %v2006 = vshrl.u32 %v2005, 7
    %v2007 = vsub.s32 %v2000, %v2006
    %v2008 = vrot.slane %v1906, %v2007
    %v2009 = vlaneseq
    %v2010 = vshrl.u32 %v2009, 7
    %v2011 = vsub.s32 %v2000, %v2010
    %v2012 = vrot.slane %v1908, %v2011
    %v2013 = vlaneseq
    %v2014 = vshrl.u32 %v2013, 7
    %v2015 = vsub.s32 %v2000, %v2014
    %v2016 = vrot.slane %v1910, %v2015
    %v2017 = vlaneseq
    %v2018 = vshrl.u32 %v2017, 7
    %v2019 = vsub.s32 %v2000, %v2018
    %v2020 = vrot.slane %v1912, %v2019
    %v2021 = vlaneseq
    %v2022 = vshrl.u32 %v2021, 7
    %v2023 = vsub.s32 %v2000, %v2022
    %v2024 = vrot.slane %v1914, %v2023
    %v2025 = vlaneseq
    %v2026 = vshrl.u32 %v2025, 7
    %v2027 = vsub.s32 %v2000, %v2026
    %v2028 = vrot.slane %v1916, %v2027
    %v2029 = vlaneseq
    %v2030 = vshrl.u32 %v2029, 7
    %v2031 = vsub.s32 %v2000, %v2030
    %v2032 = vrot.slane %v1918, %v2031
    %v2033 = vlaneseq
    %v2034 = vshrl.u32 %v2033, 7
    %v2035 = vsub.s32 %v2000, %v2034
    %v2036 = vrot.slane %v1920, %v2035
    %v2037 = vlaneseq
    %v2038 = vshrl.u32 %v2037, 7
    %v2039 = vsub.s32 %v2000, %v2038
    %v2040 = vrot.slane %v1922, %v2039
    %v2041 = vlaneseq
    %v2042 = vshrl.u32 %v2041, 7
    %v2043 = vsub.s32 %v2000, %v2042
    %v2044 = vrot.slane %v1924, %v2043
    %v2045 = vlaneseq
    %v2046 = vshrl.u32 %v2045, 7
    %v2047 = vsub.s32 %v2000, %v2046
    %v2048 = vrot.slane %v1926, %v2047
    %v2049 = vlaneseq
    %v2050 = vshrl.u32 %v2049, 7
    %v2051 = vsub.s32 %v2000, %v2050
    %v2052 = vrot.slane %v1928, %v2051
    %v2053 = vlaneseq
    %v2054 = vshrl.u32 %v2053, 7
    %v2055 = vsub.s32 %v2000, %v2054
    %v2056 = vrot.slane %v1930, %v2055
    %v2057 = vlaneseq
    %v2058 = vshrl.u32 %v2057, 7
    %v2059 = vsub.s32 %v2000, %v2058
    %v2060 = vrot.slane %v1932, %v2059
    %v2061 = vlaneseq
    %v2062 = vshrl.u32 %v2061, 7
    %v2063 = vsub.s32 %v2000, %v2062
    %v2064 = vrot.slane %v1934, %v2063
    %v2065 = vlaneseq
    %v2066 = vshrl.u32 %v2065, 7
    %v2067 = vsub.s32 %v2000, %v2066
    %v2068 = vrot.slane %v1936, %v2067
    %v2069 = vlaneseq
    %v2070 = vshrl.u32 %v2069, 7
    %v2071 = vsub.s32 %v2000, %v2070
    %v2072 = vrot.slane %v1938, %v2071
    %v2073 = vlaneseq
    %v2074 = vshrl.u32 %v2073, 7
    %v2075 = vsub.s32 %v2000, %v2074
    %v2076 = vrot.slane %v1940, %v2075
    %v2077 = vlaneseq
    %v2078 = vshrl.u32 %v2077, 7
    %v2079 = vsub.s32 %v2000, %v2078
    %v2080 = vrot.slane %v1942, %v2079
    %v2081 = vlaneseq
    %v2082 = vshrl.u32 %v2081, 7
    %v2083 = vsub.s32 %v2000, %v2082
    %v2084 = vrot.slane %v1944, %v2083
    %v2085 = vlaneseq
    %v2086 = vshrl.u32 %v2085, 7
    %v2087 = vsub.s32 %v2000, %v2086
    %v2088 = vrot.slane %v1946, %v2087
    %v2089 = vlaneseq
    %v2090 = vshrl.u32 %v2089, 7
    %v2091 = vsub.s32 %v2000, %v2090
    %v2092 = vrot.slane %v1948, %v2091
    %v2093 = vlaneseq
    %v2094 = vshrl.u32 %v2093, 7
    %v2095 = vsub.s32 %v2000, %v2094
    %v2096 = vrot.slane %v1950, %v2095
    %v2097 = vlaneseq
    %v2098 = vshrl.u32 %v2097, 7
    %v2099 = vsub.s32 %v2000, %v2098
    %v2100 = vrot.slane %v1952, %v2099
    %v2101 = vlaneseq
    %v2102 = vshrl.u32 %v2101, 7
    %v2103 = vsub.s32 %v2000, %v2102
    %v2104 = vrot.slane %v1954, %v2103
    %v2105 = vlaneseq
    %v2106 = vshrl.u32 %v2105, 7
    %v2107 = vsub.s32 %v2000, %v2106
    %v2108 = vrot.slane %v1956, %v2107
    %v2109 = vlaneseq
    %v2110 = vshrl.u32 %v2109, 7
    %v2111 = vsub.s32 %v2000, %v2110
    %v2112 = vrot.slane %v1958, %v2111
    %v2113 = vlaneseq
    %v2114 = vshrl.u32 %v2113, 7
    %v2115 = vsub.s32 %v2000, %v2114
    %v2116 = vrot.slane %v1960, %v2115
    %v2117 = vlaneseq
    %v2118 = vshrl.u32 %v2117, 7
    %v2119 = vsub.s32 %v2000, %v2118
    %v2120 = vrot.slane %v1962, %v2119
    %v2121 = vlaneseq
    %v2122 = vshrl.u32 %v2121, 7
    %v2123 = vsub.s32 %v2000, %v2122
    %v2124 = vrot.slane %v1964, %v2123
    %v2125 = vlaneseq
    %v2126 = vshrl.u32 %v2125, 7
    %v2127 = vsub.s32 %v2000, %v2126
    %v2128 = vrot.slane %v1966, %v2127
    %vm2129 = vcmask 1041409
    %v2130 = vsel %vm2129, %v2008, %v2004
    %vm2131 = vcmask 1042434
    %v2132 = vsel %vm2131, %v2012, %v2130
    %vm2133 = vcmask 1043459
    %v2134 = vsel %vm2133, %v2016, %v2132
    %vm2135 = vcmask 1044484
    %v2136 = vsel %vm2135, %v2020, %v2134
    %vm2137 = vcmask 1045509
    %v2138 = vsel %vm2137, %v2024, %v2136
    %vm2139 = vcmask 1046534
    %v2140 = vsel %vm2139, %v2028, %v2138
    %vm2141 = vcmask 1047559
    %v2142 = vsel %vm2141, %v2032, %v2140
    %v2143 = vsel %vm2129, %v2040, %v2036
    %v2144 = vsel %vm2131, %v2044, %v2143
    %v2145 = vsel %vm2133, %v2048, %v2144
    %v2146 = vsel %vm2135, %v2052, %v2145
    %v2147 = vsel %vm2137, %v2056, %v2146
    %v2148 = vsel %vm2139, %v2060, %v2147
    %v2149 = vsel %vm2141, %v2064, %v2148
    %v2150 = vsel %vm2129, %v2072, %v2068
    %v2151 = vsel %vm2131, %v2076, %v2150
    %v2152 = vsel %vm2133, %v2080, %v2151
    %v2153 = vsel %vm2135, %v2084, %v2152
    %v2154 = vsel %vm2137, %v2088, %v2153
    %v2155 = vsel %vm2139, %v2092, %v2154
    %v2156 = vsel %vm2141, %v2096, %v2155
    %v2157 = vsel %vm2129, %v2104, %v2100
    %v2158 = vsel %vm2131, %v2108, %v2157
    %v2159 = vsel %vm2133, %v2112, %v2158
    %v2160 = vsel %vm2135, %v2116, %v2159
    %v2161 = vsel %vm2137, %v2120, %v2160
    %v2162 = vsel %vm2139, %v2124, %v2161
    %v2163 = vsel %vm2141, %v2128, %v2162
    %vm2168 = vcmask 64512
    %2169 = vst.msk [vmem:[%s9] sm:$0xff] %vm2168, %v2142
    %2170 = vst.msk [vmem:[%s9 + $0x8] sm:$0xff] %vm2168, %v2149
    %2171 = vst.msk [vmem:[%s9 + $0x10] sm:$0xff] %vm2168, %v2156
    %2172 = vst.msk [vmem:[%s9 + $0x18] sm:$0xff] %vm2168, %v2163
    // Predicated region
    $region34: #{decoder_forward.1} parent=1 // pred_check
      _
    $region35: #{decoder_forward.1} parent=1 // pred_check_branch
      %2174 = sbr.rel (0) target = $region37
    $region36: #{decoder_forward.1} parent=1 // pred_region
      %s2176 = ssub.s32 4096, 4096
      %2177 = vsyncadd [#allocation3], %s2176
      %s2178 = sshll.u32 [#allocation2], 4
      %s2179 = int_to_ptr.vmem [resolvable:$true] %s2178
      %2184 = dma.vmem_to_hbm [thread:$0]  %s2179, 4096, %s8, [#allocation3], 128, 128, 8
    $region37: #{decoder_forward.1} parent=1 // pred_fallthru
      _
    // Predicated region
    $region38: #{decoder_forward.1} parent=1 // pred_check
      _
    $region39: #{decoder_forward.1} parent=1 // pred_check_branch
      %2186 = sbr.rel (0) target = $region41
    $region40: #{decoder_forward.1} parent=1 // pred_region
      _
    $region41: #{decoder_forward.1} parent=1 // pred_fallthru
      _
    // Predicated region
    $region42: #{decoder_forward.1} parent=1 // pred_check
      _
    $region43: #{decoder_forward.1} parent=1 // pred_check_branch
      %2188 = sbr.rel (0) target = $region45
    $region44: #{decoder_forward.1} parent=1 // pred_region
      %2189 = dma.done [#allocation3], 4096
    $region45: #{decoder_forward.1} parent=1 // pred_fallthru
      _
    // Predicated region
    $region46: #{decoder_forward.1} parent=1 // pred_check
      _
    $region47: #{decoder_forward.1} parent=1 // pred_check_branch
      %2191 = sbr.rel (0) target = $region49
    $region48: #{decoder_forward.1} parent=1 // pred_region
      _
    $region49: #{decoder_forward.1} parent=1 // pred_fallthru
      _
    %2192 = vsyncpa [#allocation3], 1

</llo_original>
